<compile_context>
chip_gen: v5e
topology: v5e:2x2
jax: 0.10.0
libtpu: 0.0.40
codegen_flags: <defaults>
</compile_context>

<pallas_src>
import math

import jax
import jax.numpy as jnp
import numpy as np
from jax.experimental import pallas as pl

# ----------------------------------------------------------------------------
# Problem sizes (small, consistent with the module's forward signature)
# ----------------------------------------------------------------------------
T = 8            # target sequence length
S = 16           # memory (source) sequence length
N = 2            # batch
D = 32           # d_model
NHEAD = 4        # attention heads
FF = 64          # dim_feedforward
HEAD_DIM = D // NHEAD
EPS = 1e-5
LANE = 128       # TPU lane width; each packed slab entry gets its own 128-lane block

# Column offsets (multiples of 128 -> aligned, rotate-free slices) inside the
# packed D-input weight slab `w_d` of shape (D, 6*128).
COL_SA_QKV = 0 * LANE    # (D, 3D)  fused self-attn Q|K|V   (scale folded into Q)
COL_SA_O   = 1 * LANE    # (D, D)   self-attn output projection
COL_CA_Q   = 2 * LANE    # (D, D)   cross-attn Q            (scale folded in)
COL_CA_KV  = 3 * LANE    # (D, 2D)  fused cross-attn K|V
COL_CA_O   = 4 * LANE    # (D, D)   cross-attn output projection
COL_FF1    = 5 * LANE    # (D, FF)  FFN first linear
WD_COLS    = 6 * LANE

# Rows of the packed bias / LayerNorm slab `vecs` of shape (16, 128).
ROW_SA_BQKV, ROW_SA_BO = 0, 1
ROW_CA_BQ, ROW_CA_BKV, ROW_CA_BO = 2, 3, 4
ROW_G1, ROW_B1, ROW_G2, ROW_B2, ROW_G3, ROW_B3 = 5, 6, 7, 8, 9, 10
ROW_FF_B1, ROW_FF_B2 = 11, 12
VEC_ROWS = 16

# TODO(synk): tgt_mask / memory_mask / key_padding_mask are not wired in (the
# reference forward is exercised with masks=None); Dropout is identity (eval).


# ----------------------------------------------------------------------------
# Pallas kernel: the whole decoder layer, whole batch, one program
# ----------------------------------------------------------------------------
def _decoder_layer_kernel(x_ref, mem_ref, wd_ref, w2_ref, vec_ref, out_ref):
    x = x_ref[...]        # (N*T, D) f32, batch-major rows
    mem = mem_ref[...]    # (N*S, D) f32, batch-major rows

    def vec(row, width):                      # (1, width) bias / LN vector
        return vec_ref[row:row + 1, :width]

    def wd(col, width):                       # (D, width) pre-transposed weight
        return wd_ref[:, col:col + width]

    def layer_norm(y, g, b):
        mu = jnp.mean(y, axis=-1, keepdims=True)
        var = jnp.mean((y - mu) ** 2, axis=-1, keepdims=True)
        return (y - mu) * jax.lax.rsqrt(var + EPS) * g + b

    def split_heads(z):                       # (rows, D) -> (NHEAD, rows, HEAD_DIM)
        return jnp.stack(
            [z[:, h * HEAD_DIM:(h + 1) * HEAD_DIM] for h in range(NHEAD)], axis=0)

    def merge_heads(z):                       # (NHEAD, rows, HEAD_DIM) -> (rows, D)
        return jnp.concatenate([z[h] for h in range(NHEAD)], axis=-1)

    def mha_core(q, k, v):
        # head-batched scores / PV: one dot_general each (no per-head matmul loop)
        qh, kh, vh = split_heads(q), split_heads(k), split_heads(v)
        s = jnp.einsum('hqd,hkd->hqk', qh, kh, preferred_element_type=jnp.float32)
        s = s - jnp.max(s, axis=-1, keepdims=True)
        p = jnp.exp(s)
        p = p * pl.reciprocal(jnp.sum(p, axis=-1, keepdims=True), approx=True)
        o = jnp.einsum('hqk,hkd->hqd', p, vh, preferred_element_type=jnp.float32)
        return merge_heads(o)

    def batched_attn(q, k, v, tq, tk):
        # tiny unrolled loop over batch; every linear op stays on N*rows batches
        outs = [mha_core(q[n * tq:(n + 1) * tq],
                         k[n * tk:(n + 1) * tk],
                         v[n * tk:(n + 1) * tk]) for n in range(N)]
        return jnp.concatenate(outs, axis=0)

    # ---- self attention + residual + norm1 (post-norm) ----
    qkv = jnp.dot(x, wd(COL_SA_QKV, 3 * D),
                  preferred_element_type=jnp.float32) + vec(ROW_SA_BQKV, 3 * D)
    att = batched_attn(qkv[:, :D], qkv[:, D:2 * D], qkv[:, 2 * D:], T, T)
    sa = jnp.dot(att, wd(COL_SA_O, D),
                 preferred_element_type=jnp.float32) + vec(ROW_SA_BO, D)
    x = layer_norm(x + sa, vec(ROW_G1, D), vec(ROW_B1, D))

    # ---- cross attention with memory + residual + norm2 ----
    qc = jnp.dot(x, wd(COL_CA_Q, D),
                 preferred_element_type=jnp.float32) + vec(ROW_CA_BQ, D)
    kv = jnp.dot(mem, wd(COL_CA_KV, 2 * D),
                 preferred_element_type=jnp.float32) + vec(ROW_CA_BKV, 2 * D)
    att = batched_attn(qc, kv[:, :D], kv[:, D:], T, S)
    ca = jnp.dot(att, wd(COL_CA_O, D),
                 preferred_element_type=jnp.float32) + vec(ROW_CA_BO, D)
    x = layer_norm(x + ca, vec(ROW_G2, D), vec(ROW_B2, D))

    # ---- feed-forward (Linear -> ReLU -> Linear) + residual + norm3 ----
    h = jnp.dot(x, wd(COL_FF1, FF),
                preferred_element_type=jnp.float32) + vec(ROW_FF_B1, FF)
    h = jnp.maximum(h, 0.0)
    ff = jnp.dot(h, w2_ref[...],
                 preferred_element_type=jnp.float32) + vec(ROW_FF_B2, D)
    x = layer_norm(x + ff, vec(ROW_G3, D), vec(ROW_B3, D))

    out_ref[...] = x.astype(out_ref.dtype)


# ----------------------------------------------------------------------------
# Host-side parameter packing (pre-transpose, fuse, pad to lane-aligned slabs)
# ----------------------------------------------------------------------------
def _pack_params(p):
    scale = 1.0 / math.sqrt(HEAD_DIM)

    def pad_cols(w):                       # pad columns up to one 128-lane block
        return jnp.pad(w, ((0, 0), (0, LANE - w.shape[1])))

    def pad_row(v):                        # one (1, 128) row per bias / LN vector
        v = jnp.asarray(v, jnp.float32).reshape(1, -1)
        return jnp.pad(v, ((0, 0), (0, LANE - v.shape[1])))

    # self-attn: in_proj_weight is [Wq; Wk; Wv] (3D, D); transpose so the kernel
    # computes x @ W. Fold 1/sqrt(head_dim) into the Q columns / Q bias.
    sa_wqkv = p["sa_w"].T                                  # (D, 3D)
    sa_wqkv = sa_wqkv.at[:, :D].multiply(scale)
    sa_b = p["sa_b"].at[:, :D].multiply(scale)             # (1, 3D)

    ca_wq = p["ca_w"][:D].T * scale                        # (D, D)
    ca_bq = p["ca_b"][:, :D] * scale                       # (1, D)
    ca_wkv = p["ca_w"][D:].T                               # (D, 2D)
    ca_bkv = p["ca_b"][:, D:]                              # (1, 2D)

    w_d = jnp.concatenate([
        pad_cols(sa_wqkv),          # COL_SA_QKV
        pad_cols(p["sa_ow"].T),     # COL_SA_O
        pad_cols(ca_wq),            # COL_CA_Q
        pad_cols(ca_wkv),           # COL_CA_KV
        pad_cols(p["ca_ow"].T),     # COL_CA_O
        pad_cols(p["w1"].T),        # COL_FF1
    ], axis=1)                                             # (D, 6*128)

    w_ff2 = p["w2"].T                                      # (FF, D)

    vecs = jnp.concatenate([
        pad_row(sa_b), pad_row(p["sa_ob"]),
        pad_row(ca_bq), pad_row(ca_bkv), pad_row(p["ca_ob"]),
        pad_row(p["g1"]), pad_row(p["be1"]),
        pad_row(p["g2"]), pad_row(p["be2"]),
        pad_row(p["g3"]), pad_row(p["be3"]),
        pad_row(p["bb1"]), pad_row(p["bb2"]),
        jnp.zeros((VEC_ROWS - 13, LANE), jnp.float32),
    ], axis=0)                                             # (16, 128)

    return w_d, w_ff2, vecs


# ----------------------------------------------------------------------------
# Wrapper: PyTorch (T, N, D)/(S, N, D) layout in and out
# ----------------------------------------------------------------------------
def transformer_decoder_layer(tgt_tnd, mem_snd, params):
    # batch-major, row-flattened activations; single fused Pallas program.
    x_nt = jnp.transpose(tgt_tnd, (1, 0, 2)).reshape(N * T, D)
    m_ns = jnp.transpose(mem_snd, (1, 0, 2)).reshape(N * S, D)
    w_d, w_ff2, vecs = _pack_params(params)

    out2d = pl.pallas_call(
        _decoder_layer_kernel,
        out_shape=jax.ShapeDtypeStruct((N * T, D), jnp.float32),
    )(x_nt, m_ns, w_d, w_ff2, vecs)

    return jnp.transpose(out2d.reshape(N, T, D), (1, 0, 2))    # back to (T, N, D)


# ----------------------------------------------------------------------------
# Pure-JAX reference (same math, unpacked params) for a correctness check
# ----------------------------------------------------------------------------
def _reference(tgt_tnd, mem_snd, p):
    def ln(y, g, b):
        mu = jnp.mean(y, axis=-1, keepdims=True)
        var = jnp.mean((y - mu) ** 2, axis=-1, keepdims=True)
        return (y - mu) / jnp.sqrt(var + EPS) * g + b

    def mha(q_in, kv_in, w, b, ow, ob):
        q = q_in @ w[:D].T + b[0, :D]
        k = kv_in @ w[D:2 * D].T + b[0, D:2 * D]
        v = kv_in @ w[2 * D:].T + b[0, 2 * D:]
        Tq, Nb, _ = q.shape
        Tk = k.shape[0]
        qh = q.reshape(Tq, Nb, NHEAD, HEAD_DIM) / math.sqrt(HEAD_DIM)
        kh = k.reshape(Tk, Nb, NHEAD, HEAD_DIM)
        vh = v.reshape(Tk, Nb, NHEAD, HEAD_DIM)
        s = jnp.einsum("qnhd,knhd->nhqk", qh, kh)
        a = jax.nn.softmax(s, axis=-1)
        o = jnp.einsum("nhqk,knhd->qnhd", a, vh).reshape(Tq, Nb, D)
        return o @ ow.T + ob[0]

    x = tgt_tnd
    x = ln(x + mha(x, x, p["sa_w"], p["sa_b"], p["sa_ow"], p["sa_ob"]),
           p["g1"][0], p["be1"][0])
    x = ln(x + mha(x, mem_snd, p["ca_w"], p["ca_b"], p["ca_ow"], p["ca_ob"]),
           p["g2"][0], p["be2"][0])
    h = jnp.maximum(x @ p["w1"].T + p["bb1"][0], 0.0)
    x = ln(x + h @ p["w2"].T + p["bb2"][0], p["g3"][0], p["be3"][0])
    return x


# ----------------------------------------------------------------------------
# Deterministic parameter construction + demo
# ----------------------------------------------------------------------------
def _make_params(key):
    ks = jax.random.split(key, 12)
    r = lambda k, shape, s=0.1: (jax.random.normal(k, shape, jnp.float32) * s)
    return {
        "sa_w": r(ks[0], (3 * D, D)), "sa_b": r(ks[1], (1, 3 * D)),
        "sa_ow": r(ks[2], (D, D)),    "sa_ob": r(ks[3], (1, D)),
        "ca_w": r(ks[4], (3 * D, D)), "ca_b": r(ks[5], (1, 3 * D)),
        "ca_ow": r(ks[6], (D, D)),    "ca_ob": r(ks[7], (1, D)),
        "g1": jnp.ones((1, D), jnp.float32), "be1": jnp.zeros((1, D), jnp.float32),
        "g2": jnp.ones((1, D), jnp.float32), "be2": jnp.zeros((1, D), jnp.float32),
        "g3": jnp.ones((1, D), jnp.float32), "be3": jnp.zeros((1, D), jnp.float32),
        "w1": r(ks[8], (FF, D)), "bb1": r(ks[9], (1, FF)),
        "w2": r(ks[10], (D, FF)), "bb2": r(ks[11], (1, D)),
    }


if __name__ == "__main__":
    key = jax.random.PRNGKey(0)
    k_tgt, k_mem, k_par = jax.random.split(key, 3)

    tgt = jax.random.normal(k_tgt, (T, N, D), jnp.float32)     # (T, N, D)
    memory = jax.random.normal(k_mem, (S, N, D), jnp.float32)  # (S, N, D)
    params = _make_params(k_par)

    layer = jax.jit(transformer_decoder_layer)
    out = jax.block_until_ready(layer(tgt, memory, params))

    ref = jax.block_until_ready(_reference(tgt, memory, params))
    np.testing.assert_allclose(np.asarray(out), np.asarray(ref),
                               rtol=2e-3, atol=2e-3)
    assert out.shape == (T, N, D)
    print("KERNEL_OK")
</pallas_src>

<mosaic_0001>
module attributes {stable_mosaic.version = 11 : i64} {
  func.func @_decoder_layer_kernel(%arg0: memref<16x32xf32, #tpu.memory_space<vmem>>, %arg1: memref<32x32xf32, #tpu.memory_space<vmem>>, %arg2: memref<32x768xf32, #tpu.memory_space<vmem>>, %arg3: memref<64x32xf32, #tpu.memory_space<vmem>>, %arg4: memref<16x128xf32, #tpu.memory_space<vmem>>, %arg5: memref<16x32xf32, #tpu.memory_space<vmem>>) attributes {dimension_semantics = [], scalar_prefetch = 0 : i64, scratch_operands = 0 : i64, tpu.core_type = #tpu.core_type<tc>} {
    %c0 = arith.constant 0 : index
    %c0_0 = arith.constant 0 : index
    %0 = vector.load %arg0[%c0, %c0_0] : memref<16x32xf32, #tpu.memory_space<vmem>>, vector<16x32xf32>
    %c0_1 = arith.constant 0 : index
    %c0_2 = arith.constant 0 : index
    %1 = vector.load %arg1[%c0_1, %c0_2] : memref<32x32xf32, #tpu.memory_space<vmem>>, vector<32x32xf32>
    %c0_3 = arith.constant 0 : index
    %c0_4 = arith.constant 0 : index
    %2 = vector.load %arg2[%c0_3, %c0_4] : memref<32x768xf32, #tpu.memory_space<vmem>>, vector<32x96xf32>
    %cst = arith.constant dense<0.000000e+00> : vector<16x96xf32>
    %3 = tpu.matmul %0, %2, %cst {dimension_numbers = #tpu.dot_dimension_numbers<[1], [0], [0], [1], [0, 0, 1, 1], [], []>} : vector<16x32xf32>, vector<32x96xf32>, vector<16x96xf32> -> vector<16x96xf32>
    %c0_5 = arith.constant 0 : index
    %c0_6 = arith.constant 0 : index
    %4 = vector.load %arg4[%c0_5, %c0_6] : memref<16x128xf32, #tpu.memory_space<vmem>>, vector<1x96xf32>
    %5 = vector.broadcast %4 : vector<1x96xf32> to vector<16x96xf32>
    %6 = arith.addf %3, %5 : vector<16x96xf32>
    %7 = vector.extract_strided_slice %6 {offsets = [0, 0], sizes = [16, 32], strides = [1, 1]} : vector<16x96xf32> to vector<16x32xf32>
    %8 = vector.extract_strided_slice %6 {offsets = [0, 32], sizes = [16, 32], strides = [1, 1]} : vector<16x96xf32> to vector<16x32xf32>
    %9 = vector.extract_strided_slice %6 {offsets = [0, 64], sizes = [16, 32], strides = [1, 1]} : vector<16x96xf32> to vector<16x32xf32>
    %10 = vector.extract_strided_slice %7 {offsets = [0, 0], sizes = [8, 32], strides = [1, 1]} : vector<16x32xf32> to vector<8x32xf32>
    %11 = vector.extract_strided_slice %8 {offsets = [0, 0], sizes = [8, 32], strides = [1, 1]} : vector<16x32xf32> to vector<8x32xf32>
    %12 = vector.extract_strided_slice %9 {offsets = [0, 0], sizes = [8, 32], strides = [1, 1]} : vector<16x32xf32> to vector<8x32xf32>
    %13 = vector.extract_strided_slice %10 {offsets = [0, 0], sizes = [8, 8], strides = [1, 1]} : vector<8x32xf32> to vector<8x8xf32>
    %14 = vector.extract_strided_slice %10 {offsets = [0, 8], sizes = [8, 8], strides = [1, 1]} : vector<8x32xf32> to vector<8x8xf32>
    %15 = vector.extract_strided_slice %10 {offsets = [0, 16], sizes = [8, 8], strides = [1, 1]} : vector<8x32xf32> to vector<8x8xf32>
    %16 = vector.extract_strided_slice %10 {offsets = [0, 24], sizes = [8, 8], strides = [1, 1]} : vector<8x32xf32> to vector<8x8xf32>
    %17 = vector.shape_cast %13 : vector<8x8xf32> to vector<1x8x8xf32>
    %18 = vector.shape_cast %14 : vector<8x8xf32> to vector<1x8x8xf32>
    %19 = vector.shape_cast %15 : vector<8x8xf32> to vector<1x8x8xf32>
    %20 = vector.shape_cast %16 : vector<8x8xf32> to vector<1x8x8xf32>
    %21 = tpu.concatenate %17, %18, %19, %20 in 0 : vector<1x8x8xf32>, vector<1x8x8xf32>, vector<1x8x8xf32>, vector<1x8x8xf32> -> vector<4x8x8xf32>
    %22 = vector.extract_strided_slice %11 {offsets = [0, 0], sizes = [8, 8], strides = [1, 1]} : vector<8x32xf32> to vector<8x8xf32>
    %23 = vector.extract_strided_slice %11 {offsets = [0, 8], sizes = [8, 8], strides = [1, 1]} : vector<8x32xf32> to vector<8x8xf32>
    %24 = vector.extract_strided_slice %11 {offsets = [0, 16], sizes = [8, 8], strides = [1, 1]} : vector<8x32xf32> to vector<8x8xf32>
    %25 = vector.extract_strided_slice %11 {offsets = [0, 24], sizes = [8, 8], strides = [1, 1]} : vector<8x32xf32> to vector<8x8xf32>
    %26 = vector.shape_cast %22 : vector<8x8xf32> to vector<1x8x8xf32>
    %27 = vector.shape_cast %23 : vector<8x8xf32> to vector<1x8x8xf32>
    %28 = vector.shape_cast %24 : vector<8x8xf32> to vector<1x8x8xf32>
    %29 = vector.shape_cast %25 : vector<8x8xf32> to vector<1x8x8xf32>
    %30 = tpu.concatenate %26, %27, %28, %29 in 0 : vector<1x8x8xf32>, vector<1x8x8xf32>, vector<1x8x8xf32>, vector<1x8x8xf32> -> vector<4x8x8xf32>
    %31 = vector.extract_strided_slice %12 {offsets = [0, 0], sizes = [8, 8], strides = [1, 1]} : vector<8x32xf32> to vector<8x8xf32>
    %32 = vector.extract_strided_slice %12 {offsets = [0, 8], sizes = [8, 8], strides = [1, 1]} : vector<8x32xf32> to vector<8x8xf32>
    %33 = vector.extract_strided_slice %12 {offsets = [0, 16], sizes = [8, 8], strides = [1, 1]} : vector<8x32xf32> to vector<8x8xf32>
    %34 = vector.extract_strided_slice %12 {offsets = [0, 24], sizes = [8, 8], strides = [1, 1]} : vector<8x32xf32> to vector<8x8xf32>
    %35 = vector.shape_cast %31 : vector<8x8xf32> to vector<1x8x8xf32>
    %36 = vector.shape_cast %32 : vector<8x8xf32> to vector<1x8x8xf32>
    %37 = vector.shape_cast %33 : vector<8x8xf32> to vector<1x8x8xf32>
    %38 = vector.shape_cast %34 : vector<8x8xf32> to vector<1x8x8xf32>
    %39 = tpu.concatenate %35, %36, %37, %38 in 0 : vector<1x8x8xf32>, vector<1x8x8xf32>, vector<1x8x8xf32>, vector<1x8x8xf32> -> vector<4x8x8xf32>
    "tpu.trace_start"() <{level = 10 : i32, message = "hqd,hkd->hqk"}> : () -> ()
    %cst_7 = arith.constant dense<0.000000e+00> : vector<4x8x8xf32>
    %40 = tpu.matmul %21, %30, %cst_7 {dimension_numbers = #tpu.dot_dimension_numbers<[2], [2], [1], [1], [0, 0, 0, 1, 1, 1], [0], [0]>} : vector<4x8x8xf32>, vector<4x8x8xf32>, vector<4x8x8xf32> -> vector<4x8x8xf32>
    "tpu.trace_stop"() : () -> ()
    %cst_8 = arith.constant dense<0xFF800000> : vector<4x8xf32>
    %41 = vector.multi_reduction <maximumf>, %40, %cst_8 [2] : vector<4x8x8xf32> to vector<4x8xf32>
    %42 = vector.shape_cast %41 : vector<4x8xf32> to vector<4x8x1xf32>
    %43 = vector.broadcast %42 : vector<4x8x1xf32> to vector<4x8x8xf32>
    %44 = arith.subf %40, %43 : vector<4x8x8xf32>
    %45 = math.exp %44 : vector<4x8x8xf32>
    %cst_9 = arith.constant dense<0.000000e+00> : vector<4x8xf32>
    %46 = vector.multi_reduction <add>, %45, %cst_9 [2] : vector<4x8x8xf32> to vector<4x8xf32>
    %47 = vector.shape_cast %46 : vector<4x8xf32> to vector<4x8x1xf32>
    %48 = tpu.reciprocal %47 {approx = true} : vector<4x8x1xf32> -> vector<4x8x1xf32>
    %49 = vector.broadcast %48 : vector<4x8x1xf32> to vector<4x8x8xf32>
    %50 = arith.mulf %45, %49 : vector<4x8x8xf32>
    "tpu.trace_start"() <{level = 10 : i32, message = "hqk,hkd->hqd"}> : () -> ()
    %cst_10 = arith.constant dense<0.000000e+00> : vector<4x8x8xf32>
    %51 = tpu.matmul %50, %39, %cst_10 {dimension_numbers = #tpu.dot_dimension_numbers<[2], [1], [1], [2], [0, 0, 0, 1, 1, 2], [0], [0]>} : vector<4x8x8xf32>, vector<4x8x8xf32>, vector<4x8x8xf32> -> vector<4x8x8xf32>
    "tpu.trace_stop"() : () -> ()
    %52 = vector.extract_strided_slice %51 {offsets = [0, 0, 0], sizes = [1, 8, 8], strides = [1, 1, 1]} : vector<4x8x8xf32> to vector<1x8x8xf32>
    %53 = vector.shape_cast %52 : vector<1x8x8xf32> to vector<8x8xf32>
    %54 = vector.extract_strided_slice %51 {offsets = [1, 0, 0], sizes = [1, 8, 8], strides = [1, 1, 1]} : vector<4x8x8xf32> to vector<1x8x8xf32>
    %55 = vector.shape_cast %54 : vector<1x8x8xf32> to vector<8x8xf32>
    %56 = vector.extract_strided_slice %51 {offsets = [2, 0, 0], sizes = [1, 8, 8], strides = [1, 1, 1]} : vector<4x8x8xf32> to vector<1x8x8xf32>
    %57 = vector.shape_cast %56 : vector<1x8x8xf32> to vector<8x8xf32>
    %58 = vector.extract_strided_slice %51 {offsets = [3, 0, 0], sizes = [1, 8, 8], strides = [1, 1, 1]} : vector<4x8x8xf32> to vector<1x8x8xf32>
    %59 = vector.shape_cast %58 : vector<1x8x8xf32> to vector<8x8xf32>
    %60 = tpu.concatenate %53, %55, %57, %59 in 1 : vector<8x8xf32>, vector<8x8xf32>, vector<8x8xf32>, vector<8x8xf32> -> vector<8x32xf32>
    %61 = vector.extract_strided_slice %7 {offsets = [8, 0], sizes = [8, 32], strides = [1, 1]} : vector<16x32xf32> to vector<8x32xf32>
    %62 = vector.extract_strided_slice %8 {offsets = [8, 0], sizes = [8, 32], strides = [1, 1]} : vector<16x32xf32> to vector<8x32xf32>
    %63 = vector.extract_strided_slice %9 {offsets = [8, 0], sizes = [8, 32], strides = [1, 1]} : vector<16x32xf32> to vector<8x32xf32>
    %64 = vector.extract_strided_slice %61 {offsets = [0, 0], sizes = [8, 8], strides = [1, 1]} : vector<8x32xf32> to vector<8x8xf32>
    %65 = vector.extract_strided_slice %61 {offsets = [0, 8], sizes = [8, 8], strides = [1, 1]} : vector<8x32xf32> to vector<8x8xf32>
    %66 = vector.extract_strided_slice %61 {offsets = [0, 16], sizes = [8, 8], strides = [1, 1]} : vector<8x32xf32> to vector<8x8xf32>
    %67 = vector.extract_strided_slice %61 {offsets = [0, 24], sizes = [8, 8], strides = [1, 1]} : vector<8x32xf32> to vector<8x8xf32>
    %68 = vector.shape_cast %64 : vector<8x8xf32> to vector<1x8x8xf32>
    %69 = vector.shape_cast %65 : vector<8x8xf32> to vector<1x8x8xf32>
    %70 = vector.shape_cast %66 : vector<8x8xf32> to vector<1x8x8xf32>
    %71 = vector.shape_cast %67 : vector<8x8xf32> to vector<1x8x8xf32>
    %72 = tpu.concatenate %68, %69, %70, %71 in 0 : vector<1x8x8xf32>, vector<1x8x8xf32>, vector<1x8x8xf32>, vector<1x8x8xf32> -> vector<4x8x8xf32>
    %73 = vector.extract_strided_slice %62 {offsets = [0, 0], sizes = [8, 8], strides = [1, 1]} : vector<8x32xf32> to vector<8x8xf32>
    %74 = vector.extract_strided_slice %62 {offsets = [0, 8], sizes = [8, 8], strides = [1, 1]} : vector<8x32xf32> to vector<8x8xf32>
    %75 = vector.extract_strided_slice %62 {offsets = [0, 16], sizes = [8, 8], strides = [1, 1]} : vector<8x32xf32> to vector<8x8xf32>
    %76 = vector.extract_strided_slice %62 {offsets = [0, 24], sizes = [8, 8], strides = [1, 1]} : vector<8x32xf32> to vector<8x8xf32>
    %77 = vector.shape_cast %73 : vector<8x8xf32> to vector<1x8x8xf32>
    %78 = vector.shape_cast %74 : vector<8x8xf32> to vector<1x8x8xf32>
    %79 = vector.shape_cast %75 : vector<8x8xf32> to vector<1x8x8xf32>
    %80 = vector.shape_cast %76 : vector<8x8xf32> to vector<1x8x8xf32>
    %81 = tpu.concatenate %77, %78, %79, %80 in 0 : vector<1x8x8xf32>, vector<1x8x8xf32>, vector<1x8x8xf32>, vector<1x8x8xf32> -> vector<4x8x8xf32>
    %82 = vector.extract_strided_slice %63 {offsets = [0, 0], sizes = [8, 8], strides = [1, 1]} : vector<8x32xf32> to vector<8x8xf32>
    %83 = vector.extract_strided_slice %63 {offsets = [0, 8], sizes = [8, 8], strides = [1, 1]} : vector<8x32xf32> to vector<8x8xf32>
    %84 = vector.extract_strided_slice %63 {offsets = [0, 16], sizes = [8, 8], strides = [1, 1]} : vector<8x32xf32> to vector<8x8xf32>
    %85 = vector.extract_strided_slice %63 {offsets = [0, 24], sizes = [8, 8], strides = [1, 1]} : vector<8x32xf32> to vector<8x8xf32>
    %86 = vector.shape_cast %82 : vector<8x8xf32> to vector<1x8x8xf32>
    %87 = vector.shape_cast %83 : vector<8x8xf32> to vector<1x8x8xf32>
    %88 = vector.shape_cast %84 : vector<8x8xf32> to vector<1x8x8xf32>
    %89 = vector.shape_cast %85 : vector<8x8xf32> to vector<1x8x8xf32>
    %90 = tpu.concatenate %86, %87, %88, %89 in 0 : vector<1x8x8xf32>, vector<1x8x8xf32>, vector<1x8x8xf32>, vector<1x8x8xf32> -> vector<4x8x8xf32>
    "tpu.trace_start"() <{level = 10 : i32, message = "hqd,hkd->hqk"}> : () -> ()
    %cst_11 = arith.constant dense<0.000000e+00> : vector<4x8x8xf32>
    %91 = tpu.matmul %72, %81, %cst_11 {dimension_numbers = #tpu.dot_dimension_numbers<[2], [2], [1], [1], [0, 0, 0, 1, 1, 1], [0], [0]>} : vector<4x8x8xf32>, vector<4x8x8xf32>, vector<4x8x8xf32> -> vector<4x8x8xf32>
    "tpu.trace_stop"() : () -> ()
    %cst_12 = arith.constant dense<0xFF800000> : vector<4x8xf32>
    %92 = vector.multi_reduction <maximumf>, %91, %cst_12 [2] : vector<4x8x8xf32> to vector<4x8xf32>
    %93 = vector.shape_cast %92 : vector<4x8xf32> to vector<4x8x1xf32>
    %94 = vector.broadcast %93 : vector<4x8x1xf32> to vector<4x8x8xf32>
    %95 = arith.subf %91, %94 : vector<4x8x8xf32>
    %96 = math.exp %95 : vector<4x8x8xf32>
    %cst_13 = arith.constant dense<0.000000e+00> : vector<4x8xf32>
    %97 = vector.multi_reduction <add>, %96, %cst_13 [2] : vector<4x8x8xf32> to vector<4x8xf32>
    %98 = vector.shape_cast %97 : vector<4x8xf32> to vector<4x8x1xf32>
    %99 = tpu.reciprocal %98 {approx = true} : vector<4x8x1xf32> -> vector<4x8x1xf32>
    %100 = vector.broadcast %99 : vector<4x8x1xf32> to vector<4x8x8xf32>
    %101 = arith.mulf %96, %100 : vector<4x8x8xf32>
    "tpu.trace_start"() <{level = 10 : i32, message = "hqk,hkd->hqd"}> : () -> ()
    %cst_14 = arith.constant dense<0.000000e+00> : vector<4x8x8xf32>
    %102 = tpu.matmul %101, %90, %cst_14 {dimension_numbers = #tpu.dot_dimension_numbers<[2], [1], [1], [2], [0, 0, 0, 1, 1, 2], [0], [0]>} : vector<4x8x8xf32>, vector<4x8x8xf32>, vector<4x8x8xf32> -> vector<4x8x8xf32>
    "tpu.trace_stop"() : () -> ()
    %103 = vector.extract_strided_slice %102 {offsets = [0, 0, 0], sizes = [1, 8, 8], strides = [1, 1, 1]} : vector<4x8x8xf32> to vector<1x8x8xf32>
    %104 = vector.shape_cast %103 : vector<1x8x8xf32> to vector<8x8xf32>
    %105 = vector.extract_strided_slice %102 {offsets = [1, 0, 0], sizes = [1, 8, 8], strides = [1, 1, 1]} : vector<4x8x8xf32> to vector<1x8x8xf32>
    %106 = vector.shape_cast %105 : vector<1x8x8xf32> to vector<8x8xf32>
    %107 = vector.extract_strided_slice %102 {offsets = [2, 0, 0], sizes = [1, 8, 8], strides = [1, 1, 1]} : vector<4x8x8xf32> to vector<1x8x8xf32>
    %108 = vector.shape_cast %107 : vector<1x8x8xf32> to vector<8x8xf32>
    %109 = vector.extract_strided_slice %102 {offsets = [3, 0, 0], sizes = [1, 8, 8], strides = [1, 1, 1]} : vector<4x8x8xf32> to vector<1x8x8xf32>
    %110 = vector.shape_cast %109 : vector<1x8x8xf32> to vector<8x8xf32>
    %111 = tpu.concatenate %104, %106, %108, %110 in 1 : vector<8x8xf32>, vector<8x8xf32>, vector<8x8xf32>, vector<8x8xf32> -> vector<8x32xf32>
    %112 = tpu.concatenate %60, %111 in 0 : vector<8x32xf32>, vector<8x32xf32> -> vector<16x32xf32>
    %c0_15 = arith.constant 0 : index
    %c128 = arith.constant 128 : index
    %113 = vector.load %arg2[%c0_15, %c128] : memref<32x768xf32, #tpu.memory_space<vmem>>, vector<32x32xf32>
    %cst_16 = arith.constant dense<0.000000e+00> : vector<16x32xf32>
    %114 = tpu.matmul %112, %113, %cst_16 {dimension_numbers = #tpu.dot_dimension_numbers<[1], [0], [0], [1], [0, 0, 1, 1], [], []>} : vector<16x32xf32>, vector<32x32xf32>, vector<16x32xf32> -> vector<16x32xf32>
    %c1 = arith.constant 1 : index
    %c0_17 = arith.constant 0 : index
    %115 = vector.load %arg4[%c1, %c0_17] : memref<16x128xf32, #tpu.memory_space<vmem>>, vector<1x32xf32>
    %116 = vector.broadcast %115 : vector<1x32xf32> to vector<16x32xf32>
    %117 = arith.addf %114, %116 : vector<16x32xf32>
    %118 = arith.addf %0, %117 : vector<16x32xf32>
    %c5 = arith.constant 5 : index
    %c0_18 = arith.constant 0 : index
    %119 = vector.load %arg4[%c5, %c0_18] : memref<16x128xf32, #tpu.memory_space<vmem>>, vector<1x32xf32>
    %c6 = arith.constant 6 : index
    %c0_19 = arith.constant 0 : index
    %120 = vector.load %arg4[%c6, %c0_19] : memref<16x128xf32, #tpu.memory_space<vmem>>, vector<1x32xf32>
    %cst_20 = arith.constant dense<0.000000e+00> : vector<16xf32>
    %121 = vector.multi_reduction <add>, %118, %cst_20 [1] : vector<16x32xf32> to vector<16xf32>
    %122 = vector.shape_cast %121 : vector<16xf32> to vector<16x1xf32>
    %cst_21 = arith.constant 3.200000e+01 : f32
    %123 = vector.broadcast %cst_21 : f32 to vector<16x1xf32>
    %124 = arith.divf %122, %123 : vector<16x1xf32>
    %125 = vector.broadcast %124 : vector<16x1xf32> to vector<16x32xf32>
    %126 = arith.subf %118, %125 : vector<16x32xf32>
    %127 = arith.mulf %126, %126 : vector<16x32xf32>
    %cst_22 = arith.constant dense<0.000000e+00> : vector<16xf32>
    %128 = vector.multi_reduction <add>, %127, %cst_22 [1] : vector<16x32xf32> to vector<16xf32>
    %129 = vector.shape_cast %128 : vector<16xf32> to vector<16x1xf32>
    %cst_23 = arith.constant 3.200000e+01 : f32
    %130 = vector.broadcast %cst_23 : f32 to vector<16x1xf32>
    %131 = arith.divf %129, %130 : vector<16x1xf32>
    %132 = vector.broadcast %124 : vector<16x1xf32> to vector<16x32xf32>
    %133 = arith.subf %118, %132 : vector<16x32xf32>
    %cst_24 = arith.constant 9.99999974E-6 : f32
    %134 = vector.broadcast %cst_24 : f32 to vector<16x1xf32>
    %135 = arith.addf %131, %134 : vector<16x1xf32>
    %136 = math.rsqrt %135 : vector<16x1xf32>
    %137 = vector.broadcast %136 : vector<16x1xf32> to vector<16x32xf32>
    %138 = arith.mulf %133, %137 : vector<16x32xf32>
    %139 = vector.broadcast %119 : vector<1x32xf32> to vector<16x32xf32>
    %140 = arith.mulf %138, %139 : vector<16x32xf32>
    %141 = vector.broadcast %120 : vector<1x32xf32> to vector<16x32xf32>
    %142 = arith.addf %140, %141 : vector<16x32xf32>
    %c0_25 = arith.constant 0 : index
    %c256 = arith.constant 256 : index
    %143 = vector.load %arg2[%c0_25, %c256] : memref<32x768xf32, #tpu.memory_space<vmem>>, vector<32x32xf32>
    %cst_26 = arith.constant dense<0.000000e+00> : vector<16x32xf32>
    %144 = tpu.matmul %142, %143, %cst_26 {dimension_numbers = #tpu.dot_dimension_numbers<[1], [0], [0], [1], [0, 0, 1, 1], [], []>} : vector<16x32xf32>, vector<32x32xf32>, vector<16x32xf32> -> vector<16x32xf32>
    %c2 = arith.constant 2 : index
    %c0_27 = arith.constant 0 : index
    %145 = vector.load %arg4[%c2, %c0_27] : memref<16x128xf32, #tpu.memory_space<vmem>>, vector<1x32xf32>
    %146 = vector.broadcast %145 : vector<1x32xf32> to vector<16x32xf32>
    %147 = arith.addf %144, %146 : vector<16x32xf32>
    %c0_28 = arith.constant 0 : index
    %c384 = arith.constant 384 : index
    %148 = vector.load %arg2[%c0_28, %c384] : memref<32x768xf32, #tpu.memory_space<vmem>>, vector<32x64xf32>
    %cst_29 = arith.constant dense<0.000000e+00> : vector<32x64xf32>
    %149 = tpu.matmul %1, %148, %cst_29 {dimension_numbers = #tpu.dot_dimension_numbers<[1], [0], [0], [1], [0, 0, 1, 1], [], []>} : vector<32x32xf32>, vector<32x64xf32>, vector<32x64xf32> -> vector<32x64xf32>
    %c3 = arith.constant 3 : index
    %c0_30 = arith.constant 0 : index
    %150 = vector.load %arg4[%c3, %c0_30] : memref<16x128xf32, #tpu.memory_space<vmem>>, vector<1x64xf32>
    %151 = vector.broadcast %150 : vector<1x64xf32> to vector<32x64xf32>
    %152 = arith.addf %149, %151 : vector<32x64xf32>
    %153 = vector.extract_strided_slice %152 {offsets = [0, 0], sizes = [32, 32], strides = [1, 1]} : vector<32x64xf32> to vector<32x32xf32>
    %154 = vector.extract_strided_slice %152 {offsets = [0, 32], sizes = [32, 32], strides = [1, 1]} : vector<32x64xf32> to vector<32x32xf32>
    %155 = vector.extract_strided_slice %147 {offsets = [0, 0], sizes = [8, 32], strides = [1, 1]} : vector<16x32xf32> to vector<8x32xf32>
    %156 = vector.extract_strided_slice %153 {offsets = [0, 0], sizes = [16, 32], strides = [1, 1]} : vector<32x32xf32> to vector<16x32xf32>
    %157 = vector.extract_strided_slice %154 {offsets = [0, 0], sizes = [16, 32], strides = [1, 1]} : vector<32x32xf32> to vector<16x32xf32>
    %158 = vector.extract_strided_slice %155 {offsets = [0, 0], sizes = [8, 8], strides = [1, 1]} : vector<8x32xf32> to vector<8x8xf32>
    %159 = vector.extract_strided_slice %155 {offsets = [0, 8], sizes = [8, 8], strides = [1, 1]} : vector<8x32xf32> to vector<8x8xf32>
    %160 = vector.extract_strided_slice %155 {offsets = [0, 16], sizes = [8, 8], strides = [1, 1]} : vector<8x32xf32> to vector<8x8xf32>
    %161 = vector.extract_strided_slice %155 {offsets = [0, 24], sizes = [8, 8], strides = [1, 1]} : vector<8x32xf32> to vector<8x8xf32>
    %162 = vector.shape_cast %158 : vector<8x8xf32> to vector<1x8x8xf32>
    %163 = vector.shape_cast %159 : vector<8x8xf32> to vector<1x8x8xf32>
    %164 = vector.shape_cast %160 : vector<8x8xf32> to vector<1x8x8xf32>
    %165 = vector.shape_cast %161 : vector<8x8xf32> to vector<1x8x8xf32>
    %166 = tpu.concatenate %162, %163, %164, %165 in 0 : vector<1x8x8xf32>, vector<1x8x8xf32>, vector<1x8x8xf32>, vector<1x8x8xf32> -> vector<4x8x8xf32>
    %167 = vector.extract_strided_slice %156 {offsets = [0, 0], sizes = [16, 8], strides = [1, 1]} : vector<16x32xf32> to vector<16x8xf32>
    %168 = vector.extract_strided_slice %156 {offsets = [0, 8], sizes = [16, 8], strides = [1, 1]} : vector<16x32xf32> to vector<16x8xf32>
    %169 = vector.extract_strided_slice %156 {offsets = [0, 16], sizes = [16, 8], strides = [1, 1]} : vector<16x32xf32> to vector<16x8xf32>
    %170 = vector.extract_strided_slice %156 {offsets = [0, 24], sizes = [16, 8], strides = [1, 1]} : vector<16x32xf32> to vector<16x8xf32>
    %171 = vector.shape_cast %167 : vector<16x8xf32> to vector<1x16x8xf32>
    %172 = vector.shape_cast %168 : vector<16x8xf32> to vector<1x16x8xf32>
    %173 = vector.shape_cast %169 : vector<16x8xf32> to vector<1x16x8xf32>
    %174 = vector.shape_cast %170 : vector<16x8xf32> to vector<1x16x8xf32>
    %175 = tpu.concatenate %171, %172, %173, %174 in 0 : vector<1x16x8xf32>, vector<1x16x8xf32>, vector<1x16x8xf32>, vector<1x16x8xf32> -> vector<4x16x8xf32>
    %176 = vector.extract_strided_slice %157 {offsets = [0, 0], sizes = [16, 8], strides = [1, 1]} : vector<16x32xf32> to vector<16x8xf32>
    %177 = vector.extract_strided_slice %157 {offsets = [0, 8], sizes = [16, 8], strides = [1, 1]} : vector<16x32xf32> to vector<16x8xf32>
    %178 = vector.extract_strided_slice %157 {offsets = [0, 16], sizes = [16, 8], strides = [1, 1]} : vector<16x32xf32> to vector<16x8xf32>
    %179 = vector.extract_strided_slice %157 {offsets = [0, 24], sizes = [16, 8], strides = [1, 1]} : vector<16x32xf32> to vector<16x8xf32>
    %180 = vector.shape_cast %176 : vector<16x8xf32> to vector<1x16x8xf32>
    %181 = vector.shape_cast %177 : vector<16x8xf32> to vector<1x16x8xf32>
    %182 = vector.shape_cast %178 : vector<16x8xf32> to vector<1x16x8xf32>
    %183 = vector.shape_cast %179 : vector<16x8xf32> to vector<1x16x8xf32>
    %184 = tpu.concatenate %180, %181, %182, %183 in 0 : vector<1x16x8xf32>, vector<1x16x8xf32>, vector<1x16x8xf32>, vector<1x16x8xf32> -> vector<4x16x8xf32>
    "tpu.trace_start"() <{level = 10 : i32, message = "hqd,hkd->hqk"}> : () -> ()
    %cst_31 = arith.constant dense<0.000000e+00> : vector<4x8x16xf32>
    %185 = tpu.matmul %166, %175, %cst_31 {dimension_numbers = #tpu.dot_dimension_numbers<[2], [2], [1], [1], [0, 0, 0, 1, 1, 1], [0], [0]>} : vector<4x8x8xf32>, vector<4x16x8xf32>, vector<4x8x16xf32> -> vector<4x8x16xf32>
    "tpu.trace_stop"() : () -> ()
    %cst_32 = arith.constant dense<0xFF800000> : vector<4x8xf32>
    %186 = vector.multi_reduction <maximumf>, %185, %cst_32 [2] : vector<4x8x16xf32> to vector<4x8xf32>
    %187 = vector.shape_cast %186 : vector<4x8xf32> to vector<4x8x1xf32>
    %188 = vector.broadcast %187 : vector<4x8x1xf32> to vector<4x8x16xf32>
    %189 = arith.subf %185, %188 : vector<4x8x16xf32>
    %190 = math.exp %189 : vector<4x8x16xf32>
    %cst_33 = arith.constant dense<0.000000e+00> : vector<4x8xf32>
    %191 = vector.multi_reduction <add>, %190, %cst_33 [2] : vector<4x8x16xf32> to vector<4x8xf32>
    %192 = vector.shape_cast %191 : vector<4x8xf32> to vector<4x8x1xf32>
    %193 = tpu.reciprocal %192 {approx = true} : vector<4x8x1xf32> -> vector<4x8x1xf32>
    %194 = vector.broadcast %193 : vector<4x8x1xf32> to vector<4x8x16xf32>
    %195 = arith.mulf %190, %194 : vector<4x8x16xf32>
    "tpu.trace_start"() <{level = 10 : i32, message = "hqk,hkd->hqd"}> : () -> ()
    %cst_34 = arith.constant dense<0.000000e+00> : vector<4x8x8xf32>
    %196 = tpu.matmul %195, %184, %cst_34 {dimension_numbers = #tpu.dot_dimension_numbers<[2], [1], [1], [2], [0, 0, 0, 1, 1, 2], [0], [0]>} : vector<4x8x16xf32>, vector<4x16x8xf32>, vector<4x8x8xf32> -> vector<4x8x8xf32>
    "tpu.trace_stop"() : () -> ()
    %197 = vector.extract_strided_slice %196 {offsets = [0, 0, 0], sizes = [1, 8, 8], strides = [1, 1, 1]} : vector<4x8x8xf32> to vector<1x8x8xf32>
    %198 = vector.shape_cast %197 : vector<1x8x8xf32> to vector<8x8xf32>
    %199 = vector.extract_strided_slice %196 {offsets = [1, 0, 0], sizes = [1, 8, 8], strides = [1, 1, 1]} : vector<4x8x8xf32> to vector<1x8x8xf32>
    %200 = vector.shape_cast %199 : vector<1x8x8xf32> to vector<8x8xf32>
    %201 = vector.extract_strided_slice %196 {offsets = [2, 0, 0], sizes = [1, 8, 8], strides = [1, 1, 1]} : vector<4x8x8xf32> to vector<1x8x8xf32>
    %202 = vector.shape_cast %201 : vector<1x8x8xf32> to vector<8x8xf32>
    %203 = vector.extract_strided_slice %196 {offsets = [3, 0, 0], sizes = [1, 8, 8], strides = [1, 1, 1]} : vector<4x8x8xf32> to vector<1x8x8xf32>
    %204 = vector.shape_cast %203 : vector<1x8x8xf32> to vector<8x8xf32>
    %205 = tpu.concatenate %198, %200, %202, %204 in 1 : vector<8x8xf32>, vector<8x8xf32>, vector<8x8xf32>, vector<8x8xf32> -> vector<8x32xf32>
    %206 = vector.extract_strided_slice %147 {offsets = [8, 0], sizes = [8, 32], strides = [1, 1]} : vector<16x32xf32> to vector<8x32xf32>
    %207 = vector.extract_strided_slice %153 {offsets = [16, 0], sizes = [16, 32], strides = [1, 1]} : vector<32x32xf32> to vector<16x32xf32>
    %208 = vector.extract_strided_slice %154 {offsets = [16, 0], sizes = [16, 32], strides = [1, 1]} : vector<32x32xf32> to vector<16x32xf32>
    %209 = vector.extract_strided_slice %206 {offsets = [0, 0], sizes = [8, 8], strides = [1, 1]} : vector<8x32xf32> to vector<8x8xf32>
    %210 = vector.extract_strided_slice %206 {offsets = [0, 8], sizes = [8, 8], strides = [1, 1]} : vector<8x32xf32> to vector<8x8xf32>
    %211 = vector.extract_strided_slice %206 {offsets = [0, 16], sizes = [8, 8], strides = [1, 1]} : vector<8x32xf32> to vector<8x8xf32>
    %212 = vector.extract_strided_slice %206 {offsets = [0, 24], sizes = [8, 8], strides = [1, 1]} : vector<8x32xf32> to vector<8x8xf32>
    %213 = vector.shape_cast %209 : vector<8x8xf32> to vector<1x8x8xf32>
    %214 = vector.shape_cast %210 : vector<8x8xf32> to vector<1x8x8xf32>
    %215 = vector.shape_cast %211 : vector<8x8xf32> to vector<1x8x8xf32>
    %216 = vector.shape_cast %212 : vector<8x8xf32> to vector<1x8x8xf32>
    %217 = tpu.concatenate %213, %214, %215, %216 in 0 : vector<1x8x8xf32>, vector<1x8x8xf32>, vector<1x8x8xf32>, vector<1x8x8xf32> -> vector<4x8x8xf32>
    %218 = vector.extract_strided_slice %207 {offsets = [0, 0], sizes = [16, 8], strides = [1, 1]} : vector<16x32xf32> to vector<16x8xf32>
    %219 = vector.extract_strided_slice %207 {offsets = [0, 8], sizes = [16, 8], strides = [1, 1]} : vector<16x32xf32> to vector<16x8xf32>
    %220 = vector.extract_strided_slice %207 {offsets = [0, 16], sizes = [16, 8], strides = [1, 1]} : vector<16x32xf32> to vector<16x8xf32>
    %221 = vector.extract_strided_slice %207 {offsets = [0, 24], sizes = [16, 8], strides = [1, 1]} : vector<16x32xf32> to vector<16x8xf32>
    %222 = vector.shape_cast %218 : vector<16x8xf32> to vector<1x16x8xf32>
    %223 = vector.shape_cast %219 : vector<16x8xf32> to vector<1x16x8xf32>
    %224 = vector.shape_cast %220 : vector<16x8xf32> to vector<1x16x8xf32>
    %225 = vector.shape_cast %221 : vector<16x8xf32> to vector<1x16x8xf32>
    %226 = tpu.concatenate %222, %223, %224, %225 in 0 : vector<1x16x8xf32>, vector<1x16x8xf32>, vector<1x16x8xf32>, vector<1x16x8xf32> -> vector<4x16x8xf32>
    %227 = vector.extract_strided_slice %208 {offsets = [0, 0], sizes = [16, 8], strides = [1, 1]} : vector<16x32xf32> to vector<16x8xf32>
    %228 = vector.extract_strided_slice %208 {offsets = [0, 8], sizes = [16, 8], strides = [1, 1]} : vector<16x32xf32> to vector<16x8xf32>
    %229 = vector.extract_strided_slice %208 {offsets = [0, 16], sizes = [16, 8], strides = [1, 1]} : vector<16x32xf32> to vector<16x8xf32>
    %230 = vector.extract_strided_slice %208 {offsets = [0, 24], sizes = [16, 8], strides = [1, 1]} : vector<16x32xf32> to vector<16x8xf32>
    %231 = vector.shape_cast %227 : vector<16x8xf32> to vector<1x16x8xf32>
    %232 = vector.shape_cast %228 : vector<16x8xf32> to vector<1x16x8xf32>
    %233 = vector.shape_cast %229 : vector<16x8xf32> to vector<1x16x8xf32>
    %234 = vector.shape_cast %230 : vector<16x8xf32> to vector<1x16x8xf32>
    %235 = tpu.concatenate %231, %232, %233, %234 in 0 : vector<1x16x8xf32>, vector<1x16x8xf32>, vector<1x16x8xf32>, vector<1x16x8xf32> -> vector<4x16x8xf32>
    "tpu.trace_start"() <{level = 10 : i32, message = "hqd,hkd->hqk"}> : () -> ()
    %cst_35 = arith.constant dense<0.000000e+00> : vector<4x8x16xf32>
    %236 = tpu.matmul %217, %226, %cst_35 {dimension_numbers = #tpu.dot_dimension_numbers<[2], [2], [1], [1], [0, 0, 0, 1, 1, 1], [0], [0]>} : vector<4x8x8xf32>, vector<4x16x8xf32>, vector<4x8x16xf32> -> vector<4x8x16xf32>
    "tpu.trace_stop"() : () -> ()
    %cst_36 = arith.constant dense<0xFF800000> : vector<4x8xf32>
    %237 = vector.multi_reduction <maximumf>, %236, %cst_36 [2] : vector<4x8x16xf32> to vector<4x8xf32>
    %238 = vector.shape_cast %237 : vector<4x8xf32> to vector<4x8x1xf32>
    %239 = vector.broadcast %238 : vector<4x8x1xf32> to vector<4x8x16xf32>
    %240 = arith.subf %236, %239 : vector<4x8x16xf32>
    %241 = math.exp %240 : vector<4x8x16xf32>
    %cst_37 = arith.constant dense<0.000000e+00> : vector<4x8xf32>
    %242 = vector.multi_reduction <add>, %241, %cst_37 [2] : vector<4x8x16xf32> to vector<4x8xf32>
    %243 = vector.shape_cast %242 : vector<4x8xf32> to vector<4x8x1xf32>
    %244 = tpu.reciprocal %243 {approx = true} : vector<4x8x1xf32> -> vector<4x8x1xf32>
    %245 = vector.broadcast %244 : vector<4x8x1xf32> to vector<4x8x16xf32>
    %246 = arith.mulf %241, %245 : vector<4x8x16xf32>
    "tpu.trace_start"() <{level = 10 : i32, message = "hqk,hkd->hqd"}> : () -> ()
    %cst_38 = arith.constant dense<0.000000e+00> : vector<4x8x8xf32>
    %247 = tpu.matmul %246, %235, %cst_38 {dimension_numbers = #tpu.dot_dimension_numbers<[2], [1], [1], [2], [0, 0, 0, 1, 1, 2], [0], [0]>} : vector<4x8x16xf32>, vector<4x16x8xf32>, vector<4x8x8xf32> -> vector<4x8x8xf32>
    "tpu.trace_stop"() : () -> ()
    %248 = vector.extract_strided_slice %247 {offsets = [0, 0, 0], sizes = [1, 8, 8], strides = [1, 1, 1]} : vector<4x8x8xf32> to vector<1x8x8xf32>
    %249 = vector.shape_cast %248 : vector<1x8x8xf32> to vector<8x8xf32>
    %250 = vector.extract_strided_slice %247 {offsets = [1, 0, 0], sizes = [1, 8, 8], strides = [1, 1, 1]} : vector<4x8x8xf32> to vector<1x8x8xf32>
    %251 = vector.shape_cast %250 : vector<1x8x8xf32> to vector<8x8xf32>
    %252 = vector.extract_strided_slice %247 {offsets = [2, 0, 0], sizes = [1, 8, 8], strides = [1, 1, 1]} : vector<4x8x8xf32> to vector<1x8x8xf32>
    %253 = vector.shape_cast %252 : vector<1x8x8xf32> to vector<8x8xf32>
    %254 = vector.extract_strided_slice %247 {offsets = [3, 0, 0], sizes = [1, 8, 8], strides = [1, 1, 1]} : vector<4x8x8xf32> to vector<1x8x8xf32>
    %255 = vector.shape_cast %254 : vector<1x8x8xf32> to vector<8x8xf32>
    %256 = tpu.concatenate %249, %251, %253, %255 in 1 : vector<8x8xf32>, vector<8x8xf32>, vector<8x8xf32>, vector<8x8xf32> -> vector<8x32xf32>
    %257 = tpu.concatenate %205, %256 in 0 : vector<8x32xf32>, vector<8x32xf32> -> vector<16x32xf32>
    %c0_39 = arith.constant 0 : index
    %c512 = arith.constant 512 : index
    %258 = vector.load %arg2[%c0_39, %c512] : memref<32x768xf32, #tpu.memory_space<vmem>>, vector<32x32xf32>
    %cst_40 = arith.constant dense<0.000000e+00> : vector<16x32xf32>
    %259 = tpu.matmul %257, %258, %cst_40 {dimension_numbers = #tpu.dot_dimension_numbers<[1], [0], [0], [1], [0, 0, 1, 1], [], []>} : vector<16x32xf32>, vector<32x32xf32>, vector<16x32xf32> -> vector<16x32xf32>
    %c4 = arith.constant 4 : index
    %c0_41 = arith.constant 0 : index
    %260 = vector.load %arg4[%c4, %c0_41] : memref<16x128xf32, #tpu.memory_space<vmem>>, vector<1x32xf32>
    %261 = vector.broadcast %260 : vector<1x32xf32> to vector<16x32xf32>
    %262 = arith.addf %259, %261 : vector<16x32xf32>
    %263 = arith.addf %142, %262 : vector<16x32xf32>
    %c7 = arith.constant 7 : index
    %c0_42 = arith.constant 0 : index
    %264 = vector.load %arg4[%c7, %c0_42] : memref<16x128xf32, #tpu.memory_space<vmem>>, vector<1x32xf32>
    %c8 = arith.constant 8 : index
    %c0_43 = arith.constant 0 : index
    %265 = vector.load %arg4[%c8, %c0_43] : memref<16x128xf32, #tpu.memory_space<vmem>>, vector<1x32xf32>
    %cst_44 = arith.constant dense<0.000000e+00> : vector<16xf32>
    %266 = vector.multi_reduction <add>, %263, %cst_44 [1] : vector<16x32xf32> to vector<16xf32>
    %267 = vector.shape_cast %266 : vector<16xf32> to vector<16x1xf32>
    %cst_45 = arith.constant 3.200000e+01 : f32
    %268 = vector.broadcast %cst_45 : f32 to vector<16x1xf32>
    %269 = arith.divf %267, %268 : vector<16x1xf32>
    %270 = vector.broadcast %269 : vector<16x1xf32> to vector<16x32xf32>
    %271 = arith.subf %263, %270 : vector<16x32xf32>
    %272 = arith.mulf %271, %271 : vector<16x32xf32>
    %cst_46 = arith.constant dense<0.000000e+00> : vector<16xf32>
    %273 = vector.multi_reduction <add>, %272, %cst_46 [1] : vector<16x32xf32> to vector<16xf32>
    %274 = vector.shape_cast %273 : vector<16xf32> to vector<16x1xf32>
    %cst_47 = arith.constant 3.200000e+01 : f32
    %275 = vector.broadcast %cst_47 : f32 to vector<16x1xf32>
    %276 = arith.divf %274, %275 : vector<16x1xf32>
    %277 = vector.broadcast %269 : vector<16x1xf32> to vector<16x32xf32>
    %278 = arith.subf %263, %277 : vector<16x32xf32>
    %cst_48 = arith.constant 9.99999974E-6 : f32
    %279 = vector.broadcast %cst_48 : f32 to vector<16x1xf32>
    %280 = arith.addf %276, %279 : vector<16x1xf32>
    %281 = math.rsqrt %280 : vector<16x1xf32>
    %282 = vector.broadcast %281 : vector<16x1xf32> to vector<16x32xf32>
    %283 = arith.mulf %278, %282 : vector<16x32xf32>
    %284 = vector.broadcast %264 : vector<1x32xf32> to vector<16x32xf32>
    %285 = arith.mulf %283, %284 : vector<16x32xf32>
    %286 = vector.broadcast %265 : vector<1x32xf32> to vector<16x32xf32>
    %287 = arith.addf %285, %286 : vector<16x32xf32>
    %c0_49 = arith.constant 0 : index
    %c640 = arith.constant 640 : index
    %288 = vector.load %arg2[%c0_49, %c640] : memref<32x768xf32, #tpu.memory_space<vmem>>, vector<32x64xf32>
    %cst_50 = arith.constant dense<0.000000e+00> : vector<16x64xf32>
    %289 = tpu.matmul %287, %288, %cst_50 {dimension_numbers = #tpu.dot_dimension_numbers<[1], [0], [0], [1], [0, 0, 1, 1], [], []>} : vector<16x32xf32>, vector<32x64xf32>, vector<16x64xf32> -> vector<16x64xf32>
    %c11 = arith.constant 11 : index
    %c0_51 = arith.constant 0 : index
    %290 = vector.load %arg4[%c11, %c0_51] : memref<16x128xf32, #tpu.memory_space<vmem>>, vector<1x64xf32>
    %291 = vector.broadcast %290 : vector<1x64xf32> to vector<16x64xf32>
    %292 = arith.addf %289, %291 : vector<16x64xf32>
    %cst_52 = arith.constant 0.000000e+00 : f32
    %293 = vector.broadcast %cst_52 : f32 to vector<16x64xf32>
    %294 = arith.maximumf %292, %293 : vector<16x64xf32>
    %c0_53 = arith.constant 0 : index
    %c0_54 = arith.constant 0 : index
    %295 = vector.load %arg3[%c0_53, %c0_54] : memref<64x32xf32, #tpu.memory_space<vmem>>, vector<64x32xf32>
    %cst_55 = arith.constant dense<0.000000e+00> : vector<16x32xf32>
    %296 = tpu.matmul %294, %295, %cst_55 {dimension_numbers = #tpu.dot_dimension_numbers<[1], [0], [0], [1], [0, 0, 1, 1], [], []>} : vector<16x64xf32>, vector<64x32xf32>, vector<16x32xf32> -> vector<16x32xf32>
    %c12 = arith.constant 12 : index
    %c0_56 = arith.constant 0 : index
    %297 = vector.load %arg4[%c12, %c0_56] : memref<16x128xf32, #tpu.memory_space<vmem>>, vector<1x32xf32>
    %298 = vector.broadcast %297 : vector<1x32xf32> to vector<16x32xf32>
    %299 = arith.addf %296, %298 : vector<16x32xf32>
    %300 = arith.addf %287, %299 : vector<16x32xf32>
    %c9 = arith.constant 9 : index
    %c0_57 = arith.constant 0 : index
    %301 = vector.load %arg4[%c9, %c0_57] : memref<16x128xf32, #tpu.memory_space<vmem>>, vector<1x32xf32>
    %c10 = arith.constant 10 : index
    %c0_58 = arith.constant 0 : index
    %302 = vector.load %arg4[%c10, %c0_58] : memref<16x128xf32, #tpu.memory_space<vmem>>, vector<1x32xf32>
    %cst_59 = arith.constant dense<0.000000e+00> : vector<16xf32>
    %303 = vector.multi_reduction <add>, %300, %cst_59 [1] : vector<16x32xf32> to vector<16xf32>
    %304 = vector.shape_cast %303 : vector<16xf32> to vector<16x1xf32>
    %cst_60 = arith.constant 3.200000e+01 : f32
    %305 = vector.broadcast %cst_60 : f32 to vector<16x1xf32>
    %306 = arith.divf %304, %305 : vector<16x1xf32>
    %307 = vector.broadcast %306 : vector<16x1xf32> to vector<16x32xf32>
    %308 = arith.subf %300, %307 : vector<16x32xf32>
    %309 = arith.mulf %308, %308 : vector<16x32xf32>
    %cst_61 = arith.constant dense<0.000000e+00> : vector<16xf32>
    %310 = vector.multi_reduction <add>, %309, %cst_61 [1] : vector<16x32xf32> to vector<16xf32>
    %311 = vector.shape_cast %310 : vector<16xf32> to vector<16x1xf32>
    %cst_62 = arith.constant 3.200000e+01 : f32
    %312 = vector.broadcast %cst_62 : f32 to vector<16x1xf32>
    %313 = arith.divf %311, %312 : vector<16x1xf32>
    %314 = vector.broadcast %306 : vector<16x1xf32> to vector<16x32xf32>
    %315 = arith.subf %300, %314 : vector<16x32xf32>
    %cst_63 = arith.constant 9.99999974E-6 : f32
    %316 = vector.broadcast %cst_63 : f32 to vector<16x1xf32>
    %317 = arith.addf %313, %316 : vector<16x1xf32>
    %318 = math.rsqrt %317 : vector<16x1xf32>
    %319 = vector.broadcast %318 : vector<16x1xf32> to vector<16x32xf32>
    %320 = arith.mulf %315, %319 : vector<16x32xf32>
    %321 = vector.broadcast %301 : vector<1x32xf32> to vector<16x32xf32>
    %322 = arith.mulf %320, %321 : vector<16x32xf32>
    %323 = vector.broadcast %302 : vector<1x32xf32> to vector<16x32xf32>
    %324 = arith.addf %322, %323 : vector<16x32xf32>
    %c0_64 = arith.constant 0 : index
    %c0_65 = arith.constant 0 : index
    %325 = vector.load %arg5[%c0_64, %c0_65] : memref<16x32xf32, #tpu.memory_space<vmem>>, vector<16x32xf32>
    tpu.vector_store %arg5[%c0_64, %c0_65], %324 {strides = array<i32>} : memref<16x32xf32, #tpu.memory_space<vmem>>, vector<16x32xf32>,
    return
  }
}

</mosaic_0001>

<llo_original>
// kernel: transformer_decoder_layer.1
$region0: #{transformer_decoder_layer.1}
  #allocation0 [shape = 'u32[]', space=smem, size = 0x4, offset = 0x4, fixed_abs, tag = 'smem constant byte address 0x4 - core index']
  #allocation1 [shape = 'u32[72,128]{1,0:T(1,128)}', space=vmem, size = 0x9000, scoped, tag = 'internal scratch']
  %s0 = inlined_call_operand.vmem [shape: f32[16,32], index: 0, kind: input, shape index: {}]
  %s1 = inlined_call_operand.vmem [shape: f32[32,32], index: 1, kind: input, shape index: {}]
  %s2 = inlined_call_operand.vmem [shape: f32[32,768], index: 2, kind: input, shape index: {}]
  %s3 = inlined_call_operand.vmem [shape: f32[64,32], index: 3, kind: input, shape index: {}]
  %s4 = inlined_call_operand.vmem [shape: f32[16,128], index: 4, kind: input, shape index: {}]
  %s5 = inlined_call_operand.vmem [shape: f32[16,32], index: 5, kind: output, shape index: {}]
  %s6 = sld [smem:[#allocation0]]
  $region30: #{transformer_decoder_layer.1} parent=0
    _
  %s8 = ssub.s32 1, %s6
  %s9 = scalar_select 0, %s8, %s6
  // Predicated region
  $region2: #{transformer_decoder_layer.1} parent=0 // pred_check
    _
  $region3: #{transformer_decoder_layer.1} parent=0 // pred_check_branch
    %11 = sbr.rel (0) target = $region5
  $region4: #{transformer_decoder_layer.1} parent=0 // pred_region
    _
  $region5: #{transformer_decoder_layer.1} parent=0 // pred_fallthru
    _
  // Predicated region
  $region6: #{transformer_decoder_layer.1} parent=0 // pred_check
    _
  $region7: #{transformer_decoder_layer.1} parent=0 // pred_check_branch
    %13 = sbr.rel (0) target = $region9
  $region8: #{transformer_decoder_layer.1} parent=0 // pred_region
    _
  $region9: #{transformer_decoder_layer.1} parent=0 // pred_fallthru
    _
  // Predicated region
  $region10: #{transformer_decoder_layer.1} parent=0 // pred_check
    _
  $region11: #{transformer_decoder_layer.1} parent=0 // pred_check_branch
    %15 = sbr.rel (0) target = $region13
  $region12: #{transformer_decoder_layer.1} parent=0 // pred_region
    _
  $region13: #{transformer_decoder_layer.1} parent=0 // pred_fallthru
    _
  // Predicated region
  $region14: #{transformer_decoder_layer.1} parent=0 // pred_check
    _
  $region15: #{transformer_decoder_layer.1} parent=0 // pred_check_branch
    %17 = sbr.rel (0) target = $region17
  $region16: #{transformer_decoder_layer.1} parent=0 // pred_region
    _
  $region17: #{transformer_decoder_layer.1} parent=0 // pred_fallthru
    _
  // Predicated region
  $region18: #{transformer_decoder_layer.1} parent=0 // pred_check
    _
  $region19: #{transformer_decoder_layer.1} parent=0 // pred_check_branch
    %19 = sbr.rel (0) target = $region21
  $region20: #{transformer_decoder_layer.1} parent=0 // pred_region
    _
  $region21: #{transformer_decoder_layer.1} parent=0 // pred_fallthru
    _
  %v20 = vld [vmem:[%s0] sm:$0xff]
  %v21 = vld [vmem:[%s0 + $0x8] sm:$0xff]
  %v22 = vld [vmem:[%s1] sm:$0xff]
  %v23 = vld [vmem:[%s1 + $0x8] sm:$0xff]
  %v24 = vld [vmem:[%s1 + $0x10] sm:$0xff]
  %v25 = vld [vmem:[%s1 + $0x18] sm:$0xff]
  %v26 = vld [vmem:[%s2] sm:$0xff]
  %v27 = vld [vmem:[%s2 + $0x30] sm:$0xff]
  %v28 = vld [vmem:[%s2 + $0x60] sm:$0xff]
  %v29 = vld [vmem:[%s2 + $0x90] sm:$0xff]
  %v30 = vld [vmem:[%s4] sm:$0x1]
  %v31 = vperm.slane %v30, 0
  %vm32 = vcmask 261120
  %v34 = vsel %vm32, %v20, 0
  %v37 = vsel %vm32, %v21, 0
  %39 = vmatpush.msra.mxu0 0.0
  %40 = vmatpush.msra.mxu0 0.0
  %41 = vmatpush.msra.mxu0 0.0
  %42 = vmatpush.msra.mxu0 0.0
  %43 = vmatpush.msra.mxu0 0.0
  %44 = vmatpush.msra.mxu0 0.0
  %45 = vmatpush.msra.mxu0 0.0
  %46 = vmatpush.msra.mxu0 0.0
  %47 = vmatpush.msra.mxu0 0.0
  %48 = vmatpush.msra.mxu0 0.0
  %49 = vmatpush.msra.mxu0 0.0
  %50 = vmatpush.msra.mxu0 0.0
  %51 = vmatpush.msra.mxu0 %v29
  %52 = vmatpush.msra.mxu0 %v28
  %53 = vmatpush.msra.mxu0 %v27
  %54 = vmatpush.msra.mxu0 %v26
  %55 = vmatmul.f32.gmra.mxu0 %v34
  %v56 = vpop.f32.mrf.mxu0
  %v57 = vadd.f32 %v31, %v56
  %58 = vmatmul.f32.gmra.mxu0 %v37
  %v59 = vpop.f32.mrf.mxu0
  %v60 = vadd.f32 %v31, %v59
  %61 = vdwg.mxu0
  %63 = vrot.lane.b32.xlu0 %v57, 120
  %v64 = vpop.permute.xlu0 %63
  %65 = vrot.lane.b32.xlu0 %v57, 112
  %v66 = vpop.permute.xlu0 %65
  %67 = vrot.lane.b32.xlu0 %v57, 104
  %v68 = vpop.permute.xlu0 %67
  %69 = vrot.lane.b32.xlu0 %v57, 96
  %v70 = vpop.permute.xlu0 %69
  %vm71 = vcmask 64512
  %v72 = vsel %vm71, %v57, 0
  %v74 = vsel %vm71, %v70, 0
  %76 = vmatpush.xpose.msra.mxu0 0.0
  %77 = vmatpush.xpose.msra.mxu0 0.0
  %78 = vmatpush.xpose.msra.mxu0 0.0
  %79 = vmatpush.xpose.msra.mxu0 0.0
  %80 = vmatpush.xpose.msra.mxu0 0.0
  %81 = vmatpush.xpose.msra.mxu0 0.0
  %82 = vmatpush.xpose.msra.mxu0 0.0
  %83 = vmatpush.xpose.msra.mxu0 0.0
  %84 = vmatpush.xpose.msra.mxu0 0.0
  %85 = vmatpush.xpose.msra.mxu0 0.0
  %86 = vmatpush.xpose.msra.mxu0 0.0
  %87 = vmatpush.xpose.msra.mxu0 0.0
  %88 = vmatpush.xpose.msra.mxu0 0.0
  %89 = vmatpush.xpose.msra.mxu0 0.0
  %90 = vmatpush.xpose.msra.mxu0 0.0
  %91 = vmatpush.xpose.msra.mxu0 %v74
  %92 = vmatmul.f32.gmra.mxu0 %v72
  %v93 = vpop.f32.mrf.mxu0
  %v94 = vadd.f32 0.0, %v93
  %95 = vdwg.mxu0
  %96 = vrot.lane.b32.xlu0 %v64, 96
  %v97 = vpop.permute.xlu0 %96
  %v98 = vsel %vm71, %v64, 0
  %v100 = vsel %vm71, %v97, 0
  %102 = vmatpush.xpose.msra.mxu0 0.0
  %103 = vmatpush.xpose.msra.mxu0 0.0
  %104 = vmatpush.xpose.msra.mxu0 0.0
  %105 = vmatpush.xpose.msra.mxu0 0.0
  %106 = vmatpush.xpose.msra.mxu0 0.0
  %107 = vmatpush.xpose.msra.mxu0 0.0
  %108 = vmatpush.xpose.msra.mxu0 0.0
  %109 = vmatpush.xpose.msra.mxu0 0.0
  %110 = vmatpush.xpose.msra.mxu0 0.0
  %111 = vmatpush.xpose.msra.mxu0 0.0
  %112 = vmatpush.xpose.msra.mxu0 0.0
  %113 = vmatpush.xpose.msra.mxu0 0.0
  %114 = vmatpush.xpose.msra.mxu0 0.0
  %115 = vmatpush.xpose.msra.mxu0 0.0
  %116 = vmatpush.xpose.msra.mxu0 0.0
  %117 = vmatpush.xpose.msra.mxu0 %v100
  %118 = vmatmul.f32.gmra.mxu0 %v98
  %v119 = vpop.f32.mrf.mxu0
  %v120 = vadd.f32 0.0, %v119
  %121 = vdwg.mxu0
  %122 = vrot.lane.b32.xlu0 %v66, 96
  %v123 = vpop.permute.xlu0 %122
  %v124 = vsel %vm71, %v66, 0
  %v126 = vsel %vm71, %v123, 0
  %128 = vmatpush.xpose.msra.mxu0 0.0
  %129 = vmatpush.xpose.msra.mxu0 0.0
  %130 = vmatpush.xpose.msra.mxu0 0.0
  %131 = vmatpush.xpose.msra.mxu0 0.0
  %132 = vmatpush.xpose.msra.mxu0 0.0
  %133 = vmatpush.xpose.msra.mxu0 0.0
  %134 = vmatpush.xpose.msra.mxu0 0.0
  %135 = vmatpush.xpose.msra.mxu0 0.0
  %136 = vmatpush.xpose.msra.mxu0 0.0
  %137 = vmatpush.xpose.msra.mxu0 0.0
  %138 = vmatpush.xpose.msra.mxu0 0.0
  %139 = vmatpush.xpose.msra.mxu0 0.0
  %140 = vmatpush.xpose.msra.mxu0 0.0
  %141 = vmatpush.xpose.msra.mxu0 0.0
  %142 = vmatpush.xpose.msra.mxu0 0.0
  %143 = vmatpush.xpose.msra.mxu0 %v126
  %144 = vmatmul.f32.gmra.mxu0 %v124
  %v145 = vpop.f32.mrf.mxu0
  %v146 = vadd.f32 0.0, %v145
  %147 = vdwg.mxu0
  %148 = vrot.lane.b32.xlu0 %v68, 96
  %v149 = vpop.permute.xlu0 %148
  %v150 = vsel %vm71, %v68, 0
  %v152 = vsel %vm71, %v149, 0
  %154 = vmatpush.xpose.msra.mxu0 0.0
  %155 = vmatpush.xpose.msra.mxu0 0.0
  %156 = vmatpush.xpose.msra.mxu0 0.0
  %157 = vmatpush.xpose.msra.mxu0 0.0
  %158 = vmatpush.xpose.msra.mxu0 0.0
  %159 = vmatpush.xpose.msra.mxu0 0.0
  %160 = vmatpush.xpose.msra.mxu0 0.0
  %161 = vmatpush.xpose.msra.mxu0 0.0
  %162 = vmatpush.xpose.msra.mxu0 0.0
  %163 = vmatpush.xpose.msra.mxu0 0.0
  %164 = vmatpush.xpose.msra.mxu0 0.0
  %165 = vmatpush.xpose.msra.mxu0 0.0
  %166 = vmatpush.xpose.msra.mxu0 0.0
  %167 = vmatpush.xpose.msra.mxu0 0.0
  %168 = vmatpush.xpose.msra.mxu0 0.0
  %169 = vmatpush.xpose.msra.mxu0 %v152
  %170 = vmatmul.f32.gmra.mxu0 %v150
  %v171 = vpop.f32.mrf.mxu0
  %v172 = vadd.f32 0.0, %v171
  %173 = vdwg.mxu0
  %v174 = vsel %vm71, %v94, -inf
  %175 = vmax.xlane.f32.xlu0 %v174
  %v176 = vpop.xlane.xlu0 %175
  %v177 = vsel %vm71, %v120, -inf
  %178 = vmax.xlane.f32.xlu0 %v177
  %v179 = vpop.xlane.xlu0 %178
  %v180 = vsel %vm71, %v146, -inf
  %181 = vmax.xlane.f32.xlu0 %v180
  %v182 = vpop.xlane.xlu0 %181
  %v183 = vsel %vm71, %v172, -inf
  %184 = vmax.xlane.f32.xlu0 %v183
  %v185 = vpop.xlane.xlu0 %184
  %v186 = vsub.f32 %v94, %v176
  %v187 = vsub.f32 %v120, %v179
  %v188 = vsub.f32 %v146, %v182
  %v189 = vsub.f32 %v172, %v185
  %v190 = vmul.f32 %v186, 1.442695
  %v191 = vpow.pop %v190
  %v192 = vmul.f32 %v187, 1.442695
  %v193 = vpow.pop %v192
  %v194 = vmul.f32 %v188, 1.442695
  %v195 = vpow.pop %v194
  %v196 = vmul.f32 %v189, 1.442695
  %v197 = vpow.pop %v196
  %v198 = vsel %vm71, %v191, 0.0
  %199 = vadd.xlane.f32.xlu0 %v198
  %v200 = vpop.xlane.xlu0 %199
  %v201 = vsel %vm71, %v193, 0.0
  %202 = vadd.xlane.f32.xlu0 %v201
  %v203 = vpop.xlane.xlu0 %202
  %v204 = vsel %vm71, %v195, 0.0
  %205 = vadd.xlane.f32.xlu0 %v204
  %v206 = vpop.xlane.xlu0 %205
  %v207 = vsel %vm71, %v197, 0.0
  %208 = vadd.xlane.f32.xlu0 %v207
  %v209 = vpop.xlane.xlu0 %208
  %v210 = vrcp.pop %v200
  %v211 = vrcp.pop %v203
  %v212 = vrcp.pop %v206
  %v213 = vrcp.pop %v209
  %v214 = vmul.f32 %v191, %v210
  %v215 = vmul.f32 %v193, %v211
  %v216 = vmul.f32 %v195, %v212
  %v217 = vmul.f32 %v197, %v213
  %218 = vrot.lane.b32.xlu0 %v57, 64
  %v219 = vpop.permute.xlu0 %218
  %v222 = vsel %vm71, %v214, 0
  %224 = vmatpush.msra.mxu0 0.0
  %225 = vmatpush.msra.mxu0 0.0
  %226 = vmatpush.msra.mxu0 0.0
  %227 = vmatpush.msra.mxu0 0.0
  %228 = vmatpush.msra.mxu0 0.0
  %229 = vmatpush.msra.mxu0 0.0
  %230 = vmatpush.msra.mxu0 0.0
  %231 = vmatpush.msra.mxu0 0.0
  %232 = vmatpush.msra.mxu0 0.0
  %233 = vmatpush.msra.mxu0 0.0
  %234 = vmatpush.msra.mxu0 0.0
  %235 = vmatpush.msra.mxu0 0.0
  %236 = vmatpush.msra.mxu0 0.0
  %237 = vmatpush.msra.mxu0 0.0
  %238 = vmatpush.msra.mxu0 0.0
  %239 = vmatpush.msra.mxu0 %v219
  %240 = vmatmul.f32.gmra.mxu0 %v222
  %v241 = vpop.f32.mrf.mxu0
  %v242 = vadd.f32 0.0, %v241
  %243 = vdwg.mxu0
  %244 = vrot.lane.b32.xlu0 %v64, 64
  %v245 = vpop.permute.xlu0 %244
  %v248 = vsel %vm71, %v215, 0
  %250 = vmatpush.msra.mxu0 0.0
  %251 = vmatpush.msra.mxu0 0.0
  %252 = vmatpush.msra.mxu0 0.0
  %253 = vmatpush.msra.mxu0 0.0
  %254 = vmatpush.msra.mxu0 0.0
  %255 = vmatpush.msra.mxu0 0.0
  %256 = vmatpush.msra.mxu0 0.0
  %257 = vmatpush.msra.mxu0 0.0
  %258 = vmatpush.msra.mxu0 0.0
  %259 = vmatpush.msra.mxu0 0.0
  %260 = vmatpush.msra.mxu0 0.0
  %261 = vmatpush.msra.mxu0 0.0
  %262 = vmatpush.msra.mxu0 0.0
  %263 = vmatpush.msra.mxu0 0.0
  %264 = vmatpush.msra.mxu0 0.0
  %265 = vmatpush.msra.mxu0 %v245
  %266 = vmatmul.f32.gmra.mxu0 %v248
  %v267 = vpop.f32.mrf.mxu0
  %v268 = vadd.f32 0.0, %v267
  %269 = vdwg.mxu0
  %270 = vrot.lane.b32.xlu0 %v66, 64
  %v271 = vpop.permute.xlu0 %270
  %v274 = vsel %vm71, %v216, 0
  %276 = vmatpush.msra.mxu0 0.0
  %277 = vmatpush.msra.mxu0 0.0
  %278 = vmatpush.msra.mxu0 0.0
  %279 = vmatpush.msra.mxu0 0.0
  %280 = vmatpush.msra.mxu0 0.0
  %281 = vmatpush.msra.mxu0 0.0
  %282 = vmatpush.msra.mxu0 0.0
  %283 = vmatpush.msra.mxu0 0.0
  %284 = vmatpush.msra.mxu0 0.0
  %285 = vmatpush.msra.mxu0 0.0
  %286 = vmatpush.msra.mxu0 0.0
  %287 = vmatpush.msra.mxu0 0.0
  %288 = vmatpush.msra.mxu0 0.0
  %289 = vmatpush.msra.mxu0 0.0
  %290 = vmatpush.msra.mxu0 0.0
  %291 = vmatpush.msra.mxu0 %v271
  %292 = vmatmul.f32.gmra.mxu0 %v274
  %v293 = vpop.f32.mrf.mxu0
  %v294 = vadd.f32 0.0, %v293
  %295 = vdwg.mxu0
  %296 = vrot.lane.b32.xlu0 %v68, 64
  %v297 = vpop.permute.xlu0 %296
  %v300 = vsel %vm71, %v217, 0
  %302 = vmatpush.msra.mxu0 0.0
  %303 = vmatpush.msra.mxu0 0.0
  %304 = vmatpush.msra.mxu0 0.0
  %305 = vmatpush.msra.mxu0 0.0
  %306 = vmatpush.msra.mxu0 0.0
  %307 = vmatpush.msra.mxu0 0.0
  %308 = vmatpush.msra.mxu0 0.0
  %309 = vmatpush.msra.mxu0 0.0
  %310 = vmatpush.msra.mxu0 0.0
  %311 = vmatpush.msra.mxu0 0.0
  %312 = vmatpush.msra.mxu0 0.0
  %313 = vmatpush.msra.mxu0 0.0
  %314 = vmatpush.msra.mxu0 0.0
  %315 = vmatpush.msra.mxu0 0.0
  %316 = vmatpush.msra.mxu0 0.0
  %317 = vmatpush.msra.mxu0 %v297
  %318 = vmatmul.f32.gmra.mxu0 %v300
  %v319 = vpop.f32.mrf.mxu0
  %v320 = vadd.f32 0.0, %v319
  %321 = vdwg.mxu0
  %323 = vrot.lane.b32.xlu0 %v268, 8
  %v324 = vpop.permute.xlu0 %323
  %327 = vrot.lane.b32.xlu0 %v294, 16
  %v328 = vpop.permute.xlu0 %327
  %331 = vrot.lane.b32.xlu0 %v320, 24
  %v332 = vpop.permute.xlu0 %331
  %v334 = vsel %vm71, %v242, %v324
  %vm335 = vcmask 130048
  %v336 = vsel %vm335, %v334, %v328
  %vm337 = vcmask 195584
  %v338 = vsel %vm337, %v336, %v332
  %340 = vrot.lane.b32.xlu0 %v60, 120
  %v341 = vpop.permute.xlu0 %340
  %342 = vrot.lane.b32.xlu0 %v60, 112
  %v343 = vpop.permute.xlu0 %342
  %344 = vrot.lane.b32.xlu0 %v60, 104
  %v345 = vpop.permute.xlu0 %344
  %346 = vrot.lane.b32.xlu0 %v60, 96
  %v347 = vpop.permute.xlu0 %346
  %v348 = vsel %vm71, %v60, 0
  %v350 = vsel %vm71, %v347, 0
  %352 = vmatpush.xpose.msra.mxu0 0.0
  %353 = vmatpush.xpose.msra.mxu0 0.0
  %354 = vmatpush.xpose.msra.mxu0 0.0
  %355 = vmatpush.xpose.msra.mxu0 0.0
  %356 = vmatpush.xpose.msra.mxu0 0.0
  %357 = vmatpush.xpose.msra.mxu0 0.0
  %358 = vmatpush.xpose.msra.mxu0 0.0
  %359 = vmatpush.xpose.msra.mxu0 0.0
  %360 = vmatpush.xpose.msra.mxu0 0.0
  %361 = vmatpush.xpose.msra.mxu0 0.0
  %362 = vmatpush.xpose.msra.mxu0 0.0
  %363 = vmatpush.xpose.msra.mxu0 0.0
  %364 = vmatpush.xpose.msra.mxu0 0.0
  %365 = vmatpush.xpose.msra.mxu0 0.0
  %366 = vmatpush.xpose.msra.mxu0 0.0
  %367 = vmatpush.xpose.msra.mxu0 %v350
  %368 = vmatmul.f32.gmra.mxu0 %v348
  %v369 = vpop.f32.mrf.mxu0
  %v370 = vadd.f32 0.0, %v369
  %371 = vdwg.mxu0
  %372 = vrot.lane.b32.xlu0 %v341, 96
  %v373 = vpop.permute.xlu0 %372
  %v374 = vsel %vm71, %v341, 0
  %v376 = vsel %vm71, %v373, 0
  %378 = vmatpush.xpose.msra.mxu0 0.0
  %379 = vmatpush.xpose.msra.mxu0 0.0
  %380 = vmatpush.xpose.msra.mxu0 0.0
  %381 = vmatpush.xpose.msra.mxu0 0.0
  %382 = vmatpush.xpose.msra.mxu0 0.0
  %383 = vmatpush.xpose.msra.mxu0 0.0
  %384 = vmatpush.xpose.msra.mxu0 0.0
  %385 = vmatpush.xpose.msra.mxu0 0.0
  %386 = vmatpush.xpose.msra.mxu0 0.0
  %387 = vmatpush.xpose.msra.mxu0 0.0
  %388 = vmatpush.xpose.msra.mxu0 0.0
  %389 = vmatpush.xpose.msra.mxu0 0.0
  %390 = vmatpush.xpose.msra.mxu0 0.0
  %391 = vmatpush.xpose.msra.mxu0 0.0
  %392 = vmatpush.xpose.msra.mxu0 0.0
  %393 = vmatpush.xpose.msra.mxu0 %v376
  %394 = vmatmul.f32.gmra.mxu0 %v374
  %v395 = vpop.f32.mrf.mxu0
  %v396 = vadd.f32 0.0, %v395
  %397 = vdwg.mxu0
  %398 = vrot.lane.b32.xlu0 %v343, 96
  %v399 = vpop.permute.xlu0 %398
  %v400 = vsel %vm71, %v343, 0
  %v402 = vsel %vm71, %v399, 0
  %404 = vmatpush.xpose.msra.mxu0 0.0
  %405 = vmatpush.xpose.msra.mxu0 0.0
  %406 = vmatpush.xpose.msra.mxu0 0.0
  %407 = vmatpush.xpose.msra.mxu0 0.0
  %408 = vmatpush.xpose.msra.mxu0 0.0
  %409 = vmatpush.xpose.msra.mxu0 0.0
  %410 = vmatpush.xpose.msra.mxu0 0.0
  %411 = vmatpush.xpose.msra.mxu0 0.0
  %412 = vmatpush.xpose.msra.mxu0 0.0
  %413 = vmatpush.xpose.msra.mxu0 0.0
  %414 = vmatpush.xpose.msra.mxu0 0.0
  %415 = vmatpush.xpose.msra.mxu0 0.0
  %416 = vmatpush.xpose.msra.mxu0 0.0
  %417 = vmatpush.xpose.msra.mxu0 0.0
  %418 = vmatpush.xpose.msra.mxu0 0.0
  %419 = vmatpush.xpose.msra.mxu0 %v402
  %420 = vmatmul.f32.gmra.mxu0 %v400
  %v421 = vpop.f32.mrf.mxu0
  %v422 = vadd.f32 0.0, %v421
  %423 = vdwg.mxu0
  %424 = vrot.lane.b32.xlu0 %v345, 96
  %v425 = vpop.permute.xlu0 %424
  %v426 = vsel %vm71, %v345, 0
  %v428 = vsel %vm71, %v425, 0
  %430 = vmatpush.xpose.msra.mxu0 0.0
  %431 = vmatpush.xpose.msra.mxu0 0.0
  %432 = vmatpush.xpose.msra.mxu0 0.0
  %433 = vmatpush.xpose.msra.mxu0 0.0
  %434 = vmatpush.xpose.msra.mxu0 0.0
  %435 = vmatpush.xpose.msra.mxu0 0.0
  %436 = vmatpush.xpose.msra.mxu0 0.0
  %437 = vmatpush.xpose.msra.mxu0 0.0
  %438 = vmatpush.xpose.msra.mxu0 0.0
  %439 = vmatpush.xpose.msra.mxu0 0.0
  %440 = vmatpush.xpose.msra.mxu0 0.0
  %441 = vmatpush.xpose.msra.mxu0 0.0
  %442 = vmatpush.xpose.msra.mxu0 0.0
  %443 = vmatpush.xpose.msra.mxu0 0.0
  %444 = vmatpush.xpose.msra.mxu0 0.0
  %445 = vmatpush.xpose.msra.mxu0 %v428
  %446 = vmatmul.f32.gmra.mxu0 %v426
  %v447 = vpop.f32.mrf.mxu0
  %v448 = vadd.f32 0.0, %v447
  %449 = vdwg.mxu0
  %v450 = vsel %vm71, %v370, -inf
  %451 = vmax.xlane.f32.xlu0 %v450
  %v452 = vpop.xlane.xlu0 %451
  %v453 = vsel %vm71, %v396, -inf
  %454 = vmax.xlane.f32.xlu0 %v453
  %v455 = vpop.xlane.xlu0 %454
  %v456 = vsel %vm71, %v422, -inf
  %457 = vmax.xlane.f32.xlu0 %v456
  %v458 = vpop.xlane.xlu0 %457
  %v459 = vsel %vm71, %v448, -inf
  %460 = vmax.xlane.f32.xlu0 %v459
  %v461 = vpop.xlane.xlu0 %460
  %v462 = vsub.f32 %v370, %v452
  %v463 = vsub.f32 %v396, %v455
  %v464 = vsub.f32 %v422, %v458
  %v465 = vsub.f32 %v448, %v461
  %v466 = vmul.f32 %v462, 1.442695
  %v467 = vpow.pop %v466
  %v468 = vmul.f32 %v463, 1.442695
  %v469 = vpow.pop %v468
  %v470 = vmul.f32 %v464, 1.442695
  %v471 = vpow.pop %v470
  %v472 = vmul.f32 %v465, 1.442695
  %v473 = vpow.pop %v472
  %v474 = vsel %vm71, %v467, 0.0
  %475 = vadd.xlane.f32.xlu0 %v474
  %v476 = vpop.xlane.xlu0 %475
  %v477 = vsel %vm71, %v469, 0.0
  %478 = vadd.xlane.f32.xlu0 %v477
  %v479 = vpop.xlane.xlu0 %478
  %v480 = vsel %vm71, %v471, 0.0
  %481 = vadd.xlane.f32.xlu0 %v480
  %v482 = vpop.xlane.xlu0 %481
  %v483 = vsel %vm71, %v473, 0.0
  %484 = vadd.xlane.f32.xlu0 %v483
  %v485 = vpop.xlane.xlu0 %484
  %v486 = vrcp.pop %v476
  %v487 = vrcp.pop %v479
  %v488 = vrcp.pop %v482
  %v489 = vrcp.pop %v485
  %v490 = vmul.f32 %v467, %v486
  %v491 = vmul.f32 %v469, %v487
  %v492 = vmul.f32 %v471, %v488
  %v493 = vmul.f32 %v473, %v489
  %494 = vrot.lane.b32.xlu0 %v60, 64
  %v495 = vpop.permute.xlu0 %494
  %v498 = vsel %vm71, %v490, 0
  %500 = vmatpush.msra.mxu0 0.0
  %501 = vmatpush.msra.mxu0 0.0
  %502 = vmatpush.msra.mxu0 0.0
  %503 = vmatpush.msra.mxu0 0.0
  %504 = vmatpush.msra.mxu0 0.0
  %505 = vmatpush.msra.mxu0 0.0
  %506 = vmatpush.msra.mxu0 0.0
  %507 = vmatpush.msra.mxu0 0.0
  %508 = vmatpush.msra.mxu0 0.0
  %509 = vmatpush.msra.mxu0 0.0
  %510 = vmatpush.msra.mxu0 0.0
  %511 = vmatpush.msra.mxu0 0.0
  %512 = vmatpush.msra.mxu0 0.0
  %513 = vmatpush.msra.mxu0 0.0
  %514 = vmatpush.msra.mxu0 0.0
  %515 = vmatpush.msra.mxu0 %v495
  %516 = vmatmul.f32.gmra.mxu0 %v498
  %v517 = vpop.f32.mrf.mxu0
  %v518 = vadd.f32 0.0, %v517
  %519 = vdwg.mxu0
  %520 = vrot.lane.b32.xlu0 %v341, 64
  %v521 = vpop.permute.xlu0 %520
  %v524 = vsel %vm71, %v491, 0
  %526 = vmatpush.msra.mxu0 0.0
  %527 = vmatpush.msra.mxu0 0.0
  %528 = vmatpush.msra.mxu0 0.0
  %529 = vmatpush.msra.mxu0 0.0
  %530 = vmatpush.msra.mxu0 0.0
  %531 = vmatpush.msra.mxu0 0.0
  %532 = vmatpush.msra.mxu0 0.0
  %533 = vmatpush.msra.mxu0 0.0
  %534 = vmatpush.msra.mxu0 0.0
  %535 = vmatpush.msra.mxu0 0.0
  %536 = vmatpush.msra.mxu0 0.0
  %537 = vmatpush.msra.mxu0 0.0
  %538 = vmatpush.msra.mxu0 0.0
  %539 = vmatpush.msra.mxu0 0.0
  %540 = vmatpush.msra.mxu0 0.0
  %541 = vmatpush.msra.mxu0 %v521
  %542 = vmatmul.f32.gmra.mxu0 %v524
  %v543 = vpop.f32.mrf.mxu0
  %v544 = vadd.f32 0.0, %v543
  %545 = vdwg.mxu0
  %546 = vrot.lane.b32.xlu0 %v343, 64
  %v547 = vpop.permute.xlu0 %546
  %v550 = vsel %vm71, %v492, 0
  %552 = vmatpush.msra.mxu0 0.0
  %553 = vmatpush.msra.mxu0 0.0
  %554 = vmatpush.msra.mxu0 0.0
  %555 = vmatpush.msra.mxu0 0.0
  %556 = vmatpush.msra.mxu0 0.0
  %557 = vmatpush.msra.mxu0 0.0
  %558 = vmatpush.msra.mxu0 0.0
  %559 = vmatpush.msra.mxu0 0.0
  %560 = vmatpush.msra.mxu0 0.0
  %561 = vmatpush.msra.mxu0 0.0
  %562 = vmatpush.msra.mxu0 0.0
  %563 = vmatpush.msra.mxu0 0.0
  %564 = vmatpush.msra.mxu0 0.0
  %565 = vmatpush.msra.mxu0 0.0
  %566 = vmatpush.msra.mxu0 0.0
  %567 = vmatpush.msra.mxu0 %v547
  %568 = vmatmul.f32.gmra.mxu0 %v550
  %v569 = vpop.f32.mrf.mxu0
  %v570 = vadd.f32 0.0, %v569
  %571 = vdwg.mxu0
  %572 = vrot.lane.b32.xlu0 %v345, 64
  %v573 = vpop.permute.xlu0 %572
  %v576 = vsel %vm71, %v493, 0
  %578 = vmatpush.msra.mxu0 0.0
  %579 = vmatpush.msra.mxu0 0.0
  %580 = vmatpush.msra.mxu0 0.0
  %581 = vmatpush.msra.mxu0 0.0
  %582 = vmatpush.msra.mxu0 0.0
  %583 = vmatpush.msra.mxu0 0.0
  %584 = vmatpush.msra.mxu0 0.0
  %585 = vmatpush.msra.mxu0 0.0
  %586 = vmatpush.msra.mxu0 0.0
  %587 = vmatpush.msra.mxu0 0.0
  %588 = vmatpush.msra.mxu0 0.0
  %589 = vmatpush.msra.mxu0 0.0
  %590 = vmatpush.msra.mxu0 0.0
  %591 = vmatpush.msra.mxu0 0.0
  %592 = vmatpush.msra.mxu0 0.0
  %593 = vmatpush.msra.mxu0 %v573
  %594 = vmatmul.f32.gmra.mxu0 %v576
  %v595 = vpop.f32.mrf.mxu0
  %v596 = vadd.f32 0.0, %v595
  %597 = vdwg.mxu0
  %599 = vrot.lane.b32.xlu0 %v544, 8
  %v600 = vpop.permute.xlu0 %599
  %603 = vrot.lane.b32.xlu0 %v570, 16
  %v604 = vpop.permute.xlu0 %603
  %607 = vrot.lane.b32.xlu0 %v596, 24
  %v608 = vpop.permute.xlu0 %607
  %v610 = vsel %vm71, %v518, %v600
  %v611 = vsel %vm335, %v610, %v604
  %v612 = vsel %vm337, %v611, %v608
  %v613 = vld [vmem:[%s2 + $0x8] sm:$0xff]
  %v614 = vld [vmem:[%s2 + $0x38] sm:$0xff]
  %v615 = vld [vmem:[%s2 + $0x68] sm:$0xff]
  %v616 = vld [vmem:[%s2 + $0x98] sm:$0xff]
  %v617 = vld [vmem:[%s4 + $0x1] sm:$0x1]
  %v618 = vperm.slane %v617, 0
  %v620 = vsel %vm32, %v338, 0
  %v623 = vsel %vm32, %v612, 0
  %625 = vmatpush.msra.mxu0 0.0
  %626 = vmatpush.msra.mxu0 0.0
  %627 = vmatpush.msra.mxu0 0.0
  %628 = vmatpush.msra.mxu0 0.0
  %629 = vmatpush.msra.mxu0 0.0
  %630 = vmatpush.msra.mxu0 0.0
  %631 = vmatpush.msra.mxu0 0.0
  %632 = vmatpush.msra.mxu0 0.0
  %633 = vmatpush.msra.mxu0 0.0
  %634 = vmatpush.msra.mxu0 0.0
  %635 = vmatpush.msra.mxu0 0.0
  %636 = vmatpush.msra.mxu0 0.0
  %637 = vmatpush.msra.mxu0 %v616
  %638 = vmatpush.msra.mxu0 %v615
  %639 = vmatpush.msra.mxu0 %v614
  %640 = vmatpush.msra.mxu0 %v613
  %641 = vmatmul.f32.gmra.mxu0 %v620
  %v642 = vpop.f32.mrf.mxu0
  %v643 = vadd.f32 %v618, %v642
  %644 = vmatmul.f32.gmra.mxu0 %v623
  %v645 = vpop.f32.mrf.mxu0
  %v646 = vadd.f32 %v618, %v645
  %647 = vdwg.mxu0
  %v648 = vadd.f32 %v20, %v643
  %v649 = vadd.f32 %v21, %v646
  %v650 = vld [vmem:[%s4 + $0x5] sm:$0x1]
  %v651 = vld [vmem:[%s4 + $0x6] sm:$0x1]
  %v652 = vsel %vm32, %v648, 0.0
  %653 = vadd.xlane.f32.xlu0 %v652
  %v654 = vpop.xlane.xlu0 %653
  %v655 = vsel %vm32, %v649, 0.0
  %656 = vadd.xlane.f32.xlu0 %v655
  %v657 = vpop.xlane.xlu0 %656
  %v658 = vrcp.pop 32.0
  %v659 = vmul.f32 32.0, %v658
  %v660 = vsub.f32 1.0, %v659
  %v661 = vmul.f32 %v658, %v660
  %v662 = vadd.f32 %v658, %v661
  %vm663 = vweird.f32 %v658
  %v664 = vsel %vm663, %v658, %v662
  %v665 = vmul.f32 %v654, %v664
  %v666 = vmul.f32 %v657, %v664
  %v667 = vsub.f32 %v648, %v665
  %v668 = vsub.f32 %v649, %v666
  %v669 = vmul.f32 %v667, %v667
  %v670 = vmul.f32 %v668, %v668
  %v671 = vsel %vm32, %v669, 0.0
  %672 = vadd.xlane.f32.xlu0 %v671
  %v673 = vpop.xlane.xlu0 %672
  %v674 = vsel %vm32, %v670, 0.0
  %675 = vadd.xlane.f32.xlu0 %v674
  %v676 = vpop.xlane.xlu0 %675
  %v677 = vmul.f32 %v673, %v664
  %v678 = vmul.f32 %v676, %v664
  %v679 = vadd.f32 %v677, 1e-05
  %v680 = vadd.f32 %v678, 1e-05
  %v681 = vrsqrt.pop %v679
  %v682 = vmul.f32 %v681, %v679
  %v683 = vmul.f32 %v682, %v681
  %v684 = vmul.f32 0.5, %v683
  %v685 = vsub.f32 1.5, %v684
  %v686 = vmul.f32 %v681, %v685
  %vm687 = vweird.f32 %v679
  %vm688 = vweird.f32 %v681
  %vm689 = vmor %vm687, %vm688
  %v690 = vsel %vm689, %v681, %v686
  %v691 = vrsqrt.pop %v680
  %v692 = vmul.f32 %v691, %v680
  %v693 = vmul.f32 %v692, %v691
  %v694 = vmul.f32 0.5, %v693
  %v695 = vsub.f32 1.5, %v694
  %v696 = vmul.f32 %v691, %v695
  %vm697 = vweird.f32 %v680
  %vm698 = vweird.f32 %v691
  %vm699 = vmor %vm697, %vm698
  %v700 = vsel %vm699, %v691, %v696
  %v701 = vmul.f32 %v667, %v690
  %v702 = vmul.f32 %v668, %v700
  %v703 = vperm.slane %v650, 0
  %v704 = vmul.f32 %v701, %v703
  %v705 = vmul.f32 %v702, %v703
  %v706 = vperm.slane %v651, 0
  %v707 = vadd.f32 %v704, %v706
  %v708 = vadd.f32 %v705, %v706
  %v709 = vld [vmem:[%s2 + $0x10] sm:$0xff]
  %v710 = vld [vmem:[%s2 + $0x40] sm:$0xff]
  %v711 = vld [vmem:[%s2 + $0x70] sm:$0xff]
  %v712 = vld [vmem:[%s2 + $0xa0] sm:$0xff]
  %v713 = vld [vmem:[%s4 + $0x2] sm:$0x1]
  %v714 = vperm.slane %v713, 0
  %v716 = vsel %vm32, %v707, 0
  %v719 = vsel %vm32, %v708, 0
  %721 = vmatpush.msra.mxu0 0.0
  %722 = vmatpush.msra.mxu0 0.0
  %723 = vmatpush.msra.mxu0 0.0
  %724 = vmatpush.msra.mxu0 0.0
  %725 = vmatpush.msra.mxu0 0.0
  %726 = vmatpush.msra.mxu0 0.0
  %727 = vmatpush.msra.mxu0 0.0
  %728 = vmatpush.msra.mxu0 0.0
  %729 = vmatpush.msra.mxu0 0.0
  %730 = vmatpush.msra.mxu0 0.0
  %731 = vmatpush.msra.mxu0 0.0
  %732 = vmatpush.msra.mxu0 0.0
  %733 = vmatpush.msra.mxu0 %v712
  %734 = vmatpush.msra.mxu0 %v711
  %735 = vmatpush.msra.mxu0 %v710
  %736 = vmatpush.msra.mxu0 %v709
  %737 = vmatmul.f32.gmra.mxu0 %v716
  %v738 = vpop.f32.mrf.mxu0
  %v739 = vadd.f32 %v714, %v738
  %740 = vmatmul.f32.gmra.mxu0 %v719
  %v741 = vpop.f32.mrf.mxu0
  %v742 = vadd.f32 %v714, %v741
  %743 = vdwg.mxu0
  %v744 = vld [vmem:[%s2 + $0x18] sm:$0xff]
  %v745 = vld [vmem:[%s2 + $0x48] sm:$0xff]
  %v746 = vld [vmem:[%s2 + $0x78] sm:$0xff]
  %v747 = vld [vmem:[%s2 + $0xa8] sm:$0xff]
  %v748 = vld [vmem:[%s4 + $0x3] sm:$0x1]
  %v749 = vperm.slane %v748, 0
  %v751 = vsel %vm32, %v22, 0
  %v754 = vsel %vm32, %v23, 0
  %v757 = vsel %vm32, %v24, 0
  %v760 = vsel %vm32, %v25, 0
  %762 = vmatpush.msra.mxu0 0.0
  %763 = vmatpush.msra.mxu0 0.0
  %764 = vmatpush.msra.mxu0 0.0
  %765 = vmatpush.msra.mxu0 0.0
  %766 = vmatpush.msra.mxu0 0.0
  %767 = vmatpush.msra.mxu0 0.0
  %768 = vmatpush.msra.mxu0 0.0
  %769 = vmatpush.msra.mxu0 0.0
  %770 = vmatpush.msra.mxu0 0.0
  %771 = vmatpush.msra.mxu0 0.0
  %772 = vmatpush.msra.mxu0 0.0
  %773 = vmatpush.msra.mxu0 0.0
  %774 = vmatpush.msra.mxu0 %v747
  %775 = vmatpush.msra.mxu0 %v746
  %776 = vmatpush.msra.mxu0 %v745
  %777 = vmatpush.msra.mxu0 %v744
  %778 = vmatmul.f32.gmra.mxu0 %v751
  %v779 = vpop.f32.mrf.mxu0
  %v780 = vadd.f32 %v749, %v779
  %781 = vmatmul.f32.gmra.mxu0 %v754
  %v782 = vpop.f32.mrf.mxu0
  %v783 = vadd.f32 %v749, %v782
  %784 = vmatmul.f32.gmra.mxu0 %v757
  %v785 = vpop.f32.mrf.mxu0
  %v786 = vadd.f32 %v749, %v785
  %787 = vmatmul.f32.gmra.mxu0 %v760
  %v788 = vpop.f32.mrf.mxu0
  %v789 = vadd.f32 %v749, %v788
  %790 = vdwg.mxu0
  %792 = vrot.lane.b32.xlu0 %v739, 120
  %v793 = vpop.permute.xlu0 %792
  %794 = vrot.lane.b32.xlu0 %v739, 112
  %v795 = vpop.permute.xlu0 %794
  %796 = vrot.lane.b32.xlu0 %v739, 104
  %v797 = vpop.permute.xlu0 %796
  %800 = vrot.lane.b32.xlu0 %v780, 120
  %v801 = vpop.permute.xlu0 %800
  %802 = vrot.lane.b32.xlu0 %v783, 120
  %v803 = vpop.permute.xlu0 %802
  %804 = vrot.lane.b32.xlu0 %v780, 112
  %v805 = vpop.permute.xlu0 %804
  %806 = vrot.lane.b32.xlu0 %v783, 112
  %v807 = vpop.permute.xlu0 %806
  %808 = vrot.lane.b32.xlu0 %v780, 104
  %v809 = vpop.permute.xlu0 %808
  %810 = vrot.lane.b32.xlu0 %v783, 104
  %v811 = vpop.permute.xlu0 %810
  %v812 = vsel %vm71, %v739, 0
  %v814 = vsel %vm71, %v780, 0
  %v816 = vsel %vm71, %v783, 0
  %818 = vmatpush.xpose.msra.mxu0 0.0
  %819 = vmatpush.xpose.msra.mxu0 0.0
  %820 = vmatpush.xpose.msra.mxu0 0.0
  %821 = vmatpush.xpose.msra.mxu0 0.0
  %822 = vmatpush.xpose.msra.mxu0 0.0
  %823 = vmatpush.xpose.msra.mxu0 0.0
  %824 = vmatpush.xpose.msra.mxu0 0.0
  %825 = vmatpush.xpose.msra.mxu0 0.0
  %826 = vmatpush.xpose.msra.mxu0 0.0
  %827 = vmatpush.xpose.msra.mxu0 0.0
  %828 = vmatpush.xpose.msra.mxu0 0.0
  %829 = vmatpush.xpose.msra.mxu0 0.0
  %830 = vmatpush.xpose.msra.mxu0 0.0
  %831 = vmatpush.xpose.msra.mxu0 0.0
  %832 = vmatpush.xpose.msra.mxu0 %v816
  %833 = vmatpush.xpose.msra.mxu0 %v814
  %834 = vmatmul.f32.gmra.mxu0 %v812
  %v835 = vpop.f32.mrf.mxu0
  %v836 = vadd.f32 0.0, %v835
  %837 = vdwg.mxu0
  %v838 = vsel %vm71, %v793, 0
  %v840 = vsel %vm71, %v801, 0
  %v842 = vsel %vm71, %v803, 0
  %844 = vmatpush.xpose.msra.mxu0 0.0
  %845 = vmatpush.xpose.msra.mxu0 0.0
  %846 = vmatpush.xpose.msra.mxu0 0.0
  %847 = vmatpush.xpose.msra.mxu0 0.0
  %848 = vmatpush.xpose.msra.mxu0 0.0
  %849 = vmatpush.xpose.msra.mxu0 0.0
  %850 = vmatpush.xpose.msra.mxu0 0.0
  %851 = vmatpush.xpose.msra.mxu0 0.0
  %852 = vmatpush.xpose.msra.mxu0 0.0
  %853 = vmatpush.xpose.msra.mxu0 0.0
  %854 = vmatpush.xpose.msra.mxu0 0.0
  %855 = vmatpush.xpose.msra.mxu0 0.0
  %856 = vmatpush.xpose.msra.mxu0 0.0
  %857 = vmatpush.xpose.msra.mxu0 0.0
  %858 = vmatpush.xpose.msra.mxu0 %v842
  %859 = vmatpush.xpose.msra.mxu0 %v840
  %860 = vmatmul.f32.gmra.mxu0 %v838
  %v861 = vpop.f32.mrf.mxu0
  %v862 = vadd.f32 0.0, %v861
  %863 = vdwg.mxu0
  %v864 = vsel %vm71, %v795, 0
  %v866 = vsel %vm71, %v805, 0
  %v868 = vsel %vm71, %v807, 0
  %870 = vmatpush.xpose.msra.mxu0 0.0
  %871 = vmatpush.xpose.msra.mxu0 0.0
  %872 = vmatpush.xpose.msra.mxu0 0.0
  %873 = vmatpush.xpose.msra.mxu0 0.0
  %874 = vmatpush.xpose.msra.mxu0 0.0
  %875 = vmatpush.xpose.msra.mxu0 0.0
  %876 = vmatpush.xpose.msra.mxu0 0.0
  %877 = vmatpush.xpose.msra.mxu0 0.0
  %878 = vmatpush.xpose.msra.mxu0 0.0
  %879 = vmatpush.xpose.msra.mxu0 0.0
  %880 = vmatpush.xpose.msra.mxu0 0.0
  %881 = vmatpush.xpose.msra.mxu0 0.0
  %882 = vmatpush.xpose.msra.mxu0 0.0
  %883 = vmatpush.xpose.msra.mxu0 0.0
  %884 = vmatpush.xpose.msra.mxu0 %v868
  %885 = vmatpush.xpose.msra.mxu0 %v866
  %886 = vmatmul.f32.gmra.mxu0 %v864
  %v887 = vpop.f32.mrf.mxu0
  %v888 = vadd.f32 0.0, %v887
  %889 = vdwg.mxu0
  %v890 = vsel %vm71, %v797, 0
  %v892 = vsel %vm71, %v809, 0
  %v894 = vsel %vm71, %v811, 0
  %896 = vmatpush.xpose.msra.mxu0 0.0
  %897 = vmatpush.xpose.msra.mxu0 0.0
  %898 = vmatpush.xpose.msra.mxu0 0.0
  %899 = vmatpush.xpose.msra.mxu0 0.0
  %900 = vmatpush.xpose.msra.mxu0 0.0
  %901 = vmatpush.xpose.msra.mxu0 0.0
  %902 = vmatpush.xpose.msra.mxu0 0.0
  %903 = vmatpush.xpose.msra.mxu0 0.0
  %904 = vmatpush.xpose.msra.mxu0 0.0
  %905 = vmatpush.xpose.msra.mxu0 0.0
  %906 = vmatpush.xpose.msra.mxu0 0.0
  %907 = vmatpush.xpose.msra.mxu0 0.0
  %908 = vmatpush.xpose.msra.mxu0 0.0
  %909 = vmatpush.xpose.msra.mxu0 0.0
  %910 = vmatpush.xpose.msra.mxu0 %v894
  %911 = vmatpush.xpose.msra.mxu0 %v892
  %912 = vmatmul.f32.gmra.mxu0 %v890
  %v913 = vpop.f32.mrf.mxu0
  %v914 = vadd.f32 0.0, %v913
  %915 = vdwg.mxu0
  %v916 = vsel %vm335, %v836, -inf
  %917 = vmax.xlane.f32.xlu0 %v916
  %v918 = vpop.xlane.xlu0 %917
  %v919 = vsel %vm335, %v862, -inf
  %920 = vmax.xlane.f32.xlu0 %v919
  %v921 = vpop.xlane.xlu0 %920
  %v922 = vsel %vm335, %v888, -inf
  %923 = vmax.xlane.f32.xlu0 %v922
  %v924 = vpop.xlane.xlu0 %923
  %v925 = vsel %vm335, %v914, -inf
  %926 = vmax.xlane.f32.xlu0 %v925
  %v927 = vpop.xlane.xlu0 %926
  %v928 = vsub.f32 %v836, %v918
  %v929 = vsub.f32 %v862, %v921
  %v930 = vsub.f32 %v888, %v924
  %v931 = vsub.f32 %v914, %v927
  %v932 = vmul.f32 %v928, 1.442695
  %v933 = vpow.pop %v932
  %v934 = vmul.f32 %v929, 1.442695
  %v935 = vpow.pop %v934
  %v936 = vmul.f32 %v930, 1.442695
  %v937 = vpow.pop %v936
  %v938 = vmul.f32 %v931, 1.442695
  %v939 = vpow.pop %v938
  %v940 = vsel %vm335, %v933, 0.0
  %941 = vadd.xlane.f32.xlu0 %v940
  %v942 = vpop.xlane.xlu0 %941
  %v943 = vsel %vm335, %v935, 0.0
  %944 = vadd.xlane.f32.xlu0 %v943
  %v945 = vpop.xlane.xlu0 %944
  %v946 = vsel %vm335, %v937, 0.0
  %947 = vadd.xlane.f32.xlu0 %v946
  %v948 = vpop.xlane.xlu0 %947
  %v949 = vsel %vm335, %v939, 0.0
  %950 = vadd.xlane.f32.xlu0 %v949
  %v951 = vpop.xlane.xlu0 %950
  %v952 = vrcp.pop %v942
  %v953 = vrcp.pop %v945
  %v954 = vrcp.pop %v948
  %v955 = vrcp.pop %v951
  %v956 = vmul.f32 %v933, %v952
  %v957 = vmul.f32 %v935, %v953
  %v958 = vmul.f32 %v937, %v954
  %v959 = vmul.f32 %v939, %v955
  %960 = vrot.lane.b32.xlu0 %v780, 96
  %v961 = vpop.permute.xlu0 %960
  %962 = vrot.lane.b32.xlu0 %v783, 96
  %v963 = vpop.permute.xlu0 %962
  %v967 = vsel %vm335, %v956, 0
  %969 = vmatpush.msra.mxu0 0.0
  %970 = vmatpush.msra.mxu0 0.0
  %971 = vmatpush.msra.mxu0 0.0
  %972 = vmatpush.msra.mxu0 0.0
  %973 = vmatpush.msra.mxu0 0.0
  %974 = vmatpush.msra.mxu0 0.0
  %975 = vmatpush.msra.mxu0 0.0
  %976 = vmatpush.msra.mxu0 0.0
  %977 = vmatpush.msra.mxu0 0.0
  %978 = vmatpush.msra.mxu0 0.0
  %979 = vmatpush.msra.mxu0 0.0
  %980 = vmatpush.msra.mxu0 0.0
  %981 = vmatpush.msra.mxu0 0.0
  %982 = vmatpush.msra.mxu0 0.0
  %983 = vmatpush.msra.mxu0 %v963
  %984 = vmatpush.msra.mxu0 %v961
  %985 = vmatmul.f32.gmra.mxu0 %v967
  %v986 = vpop.f32.mrf.mxu0
  %v987 = vadd.f32 0.0, %v986
  %988 = vdwg.mxu0
  %989 = vrot.lane.b32.xlu0 %v801, 96
  %v990 = vpop.permute.xlu0 %989
  %991 = vrot.lane.b32.xlu0 %v803, 96
  %v992 = vpop.permute.xlu0 %991
  %v996 = vsel %vm335, %v957, 0
  %998 = vmatpush.msra.mxu0 0.0
  %999 = vmatpush.msra.mxu0 0.0
  %1000 = vmatpush.msra.mxu0 0.0
  %1001 = vmatpush.msra.mxu0 0.0
  %1002 = vmatpush.msra.mxu0 0.0
  %1003 = vmatpush.msra.mxu0 0.0
  %1004 = vmatpush.msra.mxu0 0.0
  %1005 = vmatpush.msra.mxu0 0.0
  %1006 = vmatpush.msra.mxu0 0.0
  %1007 = vmatpush.msra.mxu0 0.0
  %1008 = vmatpush.msra.mxu0 0.0
  %1009 = vmatpush.msra.mxu0 0.0
  %1010 = vmatpush.msra.mxu0 0.0
  %1011 = vmatpush.msra.mxu0 0.0
  %1012 = vmatpush.msra.mxu0 %v992
  %1013 = vmatpush.msra.mxu0 %v990
  %1014 = vmatmul.f32.gmra.mxu0 %v996
  %v1015 = vpop.f32.mrf.mxu0
  %v1016 = vadd.f32 0.0, %v1015
  %1017 = vdwg.mxu0
  %1018 = vrot.lane.b32.xlu0 %v805, 96
  %v1019 = vpop.permute.xlu0 %1018
  %1020 = vrot.lane.b32.xlu0 %v807, 96
  %v1021 = vpop.permute.xlu0 %1020
  %v1025 = vsel %vm335, %v958, 0
  %1027 = vmatpush.msra.mxu0 0.0
  %1028 = vmatpush.msra.mxu0 0.0
  %1029 = vmatpush.msra.mxu0 0.0
  %1030 = vmatpush.msra.mxu0 0.0
  %1031 = vmatpush.msra.mxu0 0.0
  %1032 = vmatpush.msra.mxu0 0.0
  %1033 = vmatpush.msra.mxu0 0.0
  %1034 = vmatpush.msra.mxu0 0.0
  %1035 = vmatpush.msra.mxu0 0.0
  %1036 = vmatpush.msra.mxu0 0.0
  %1037 = vmatpush.msra.mxu0 0.0
  %1038 = vmatpush.msra.mxu0 0.0
  %1039 = vmatpush.msra.mxu0 0.0
  %1040 = vmatpush.msra.mxu0 0.0
  %1041 = vmatpush.msra.mxu0 %v1021
  %1042 = vmatpush.msra.mxu0 %v1019
  %1043 = vmatmul.f32.gmra.mxu0 %v1025
  %v1044 = vpop.f32.mrf.mxu0
  %v1045 = vadd.f32 0.0, %v1044
  %1046 = vdwg.mxu0
  %1047 = vrot.lane.b32.xlu0 %v809, 96
  %v1048 = vpop.permute.xlu0 %1047
  %1049 = vrot.lane.b32.xlu0 %v811, 96
  %v1050 = vpop.permute.xlu0 %1049
  %v1054 = vsel %vm335, %v959, 0
  %1056 = vmatpush.msra.mxu0 0.0
  %1057 = vmatpush.msra.mxu0 0.0
  %1058 = vmatpush.msra.mxu0 0.0
  %1059 = vmatpush.msra.mxu0 0.0
  %1060 = vmatpush.msra.mxu0 0.0
  %1061 = vmatpush.msra.mxu0 0.0
  %1062 = vmatpush.msra.mxu0 0.0
  %1063 = vmatpush.msra.mxu0 0.0
  %1064 = vmatpush.msra.mxu0 0.0
  %1065 = vmatpush.msra.mxu0 0.0
  %1066 = vmatpush.msra.mxu0 0.0
  %1067 = vmatpush.msra.mxu0 0.0
  %1068 = vmatpush.msra.mxu0 0.0
  %1069 = vmatpush.msra.mxu0 0.0
  %1070 = vmatpush.msra.mxu0 %v1050
  %1071 = vmatpush.msra.mxu0 %v1048
  %1072 = vmatmul.f32.gmra.mxu0 %v1054
  %v1073 = vpop.f32.mrf.mxu0
  %v1074 = vadd.f32 0.0, %v1073
  %1075 = vdwg.mxu0
  %1077 = vrot.lane.b32.xlu0 %v1016, 8
  %v1078 = vpop.permute.xlu0 %1077
  %1081 = vrot.lane.b32.xlu0 %v1045, 16
  %v1082 = vpop.permute.xlu0 %1081
  %1085 = vrot.lane.b32.xlu0 %v1074, 24
  %v1086 = vpop.permute.xlu0 %1085
  %v1088 = vsel %vm71, %v987, %v1078
  %v1089 = vsel %vm335, %v1088, %v1082
  %v1090 = vsel %vm337, %v1089, %v1086
  %1092 = vrot.lane.b32.xlu0 %v742, 120
  %v1093 = vpop.permute.xlu0 %1092
  %1094 = vrot.lane.b32.xlu0 %v742, 112
  %v1095 = vpop.permute.xlu0 %1094
  %1096 = vrot.lane.b32.xlu0 %v742, 104
  %v1097 = vpop.permute.xlu0 %1096
  %1100 = vrot.lane.b32.xlu0 %v786, 120
  %v1101 = vpop.permute.xlu0 %1100
  %1102 = vrot.lane.b32.xlu0 %v789, 120
  %v1103 = vpop.permute.xlu0 %1102
  %1104 = vrot.lane.b32.xlu0 %v786, 112
  %v1105 = vpop.permute.xlu0 %1104
  %1106 = vrot.lane.b32.xlu0 %v789, 112
  %v1107 = vpop.permute.xlu0 %1106
  %1108 = vrot.lane.b32.xlu0 %v786, 104
  %v1109 = vpop.permute.xlu0 %1108
  %1110 = vrot.lane.b32.xlu0 %v789, 104
  %v1111 = vpop.permute.xlu0 %1110
  %v1112 = vsel %vm71, %v742, 0
  %v1114 = vsel %vm71, %v786, 0
  %v1116 = vsel %vm71, %v789, 0
  %1118 = vmatpush.xpose.msra.mxu0 0.0
  %1119 = vmatpush.xpose.msra.mxu0 0.0
  %1120 = vmatpush.xpose.msra.mxu0 0.0
  %1121 = vmatpush.xpose.msra.mxu0 0.0
  %1122 = vmatpush.xpose.msra.mxu0 0.0
  %1123 = vmatpush.xpose.msra.mxu0 0.0
  %1124 = vmatpush.xpose.msra.mxu0 0.0
  %1125 = vmatpush.xpose.msra.mxu0 0.0
  %1126 = vmatpush.xpose.msra.mxu0 0.0
  %1127 = vmatpush.xpose.msra.mxu0 0.0
  %1128 = vmatpush.xpose.msra.mxu0 0.0
  %1129 = vmatpush.xpose.msra.mxu0 0.0
  %1130 = vmatpush.xpose.msra.mxu0 0.0
  %1131 = vmatpush.xpose.msra.mxu0 0.0
  %1132 = vmatpush.xpose.msra.mxu0 %v1116
  %1133 = vmatpush.xpose.msra.mxu0 %v1114
  %1134 = vmatmul.f32.gmra.mxu0 %v1112
  %v1135 = vpop.f32.mrf.mxu0
  %v1136 = vadd.f32 0.0, %v1135
  %1137 = vdwg.mxu0
  %v1138 = vsel %vm71, %v1093, 0
  %v1140 = vsel %vm71, %v1101, 0
  %v1142 = vsel %vm71, %v1103, 0
  %1144 = vmatpush.xpose.msra.mxu0 0.0
  %1145 = vmatpush.xpose.msra.mxu0 0.0
  %1146 = vmatpush.xpose.msra.mxu0 0.0
  %1147 = vmatpush.xpose.msra.mxu0 0.0
  %1148 = vmatpush.xpose.msra.mxu0 0.0
  %1149 = vmatpush.xpose.msra.mxu0 0.0
  %1150 = vmatpush.xpose.msra.mxu0 0.0
  %1151 = vmatpush.xpose.msra.mxu0 0.0
  %1152 = vmatpush.xpose.msra.mxu0 0.0
  %1153 = vmatpush.xpose.msra.mxu0 0.0
  %1154 = vmatpush.xpose.msra.mxu0 0.0
  %1155 = vmatpush.xpose.msra.mxu0 0.0
  %1156 = vmatpush.xpose.msra.mxu0 0.0
  %1157 = vmatpush.xpose.msra.mxu0 0.0
  %1158 = vmatpush.xpose.msra.mxu0 %v1142
  %1159 = vmatpush.xpose.msra.mxu0 %v1140
  %1160 = vmatmul.f32.gmra.mxu0 %v1138
  %v1161 = vpop.f32.mrf.mxu0
  %v1162 = vadd.f32 0.0, %v1161
  %1163 = vdwg.mxu0
  %v1164 = vsel %vm71, %v1095, 0
  %v1166 = vsel %vm71, %v1105, 0
  %v1168 = vsel %vm71, %v1107, 0
  %1170 = vmatpush.xpose.msra.mxu0 0.0
  %1171 = vmatpush.xpose.msra.mxu0 0.0
  %1172 = vmatpush.xpose.msra.mxu0 0.0
  %1173 = vmatpush.xpose.msra.mxu0 0.0
  %1174 = vmatpush.xpose.msra.mxu0 0.0
  %1175 = vmatpush.xpose.msra.mxu0 0.0
  %1176 = vmatpush.xpose.msra.mxu0 0.0
  %1177 = vmatpush.xpose.msra.mxu0 0.0
  %1178 = vmatpush.xpose.msra.mxu0 0.0
  %1179 = vmatpush.xpose.msra.mxu0 0.0
  %1180 = vmatpush.xpose.msra.mxu0 0.0
  %1181 = vmatpush.xpose.msra.mxu0 0.0
  %1182 = vmatpush.xpose.msra.mxu0 0.0
  %1183 = vmatpush.xpose.msra.mxu0 0.0
  %1184 = vmatpush.xpose.msra.mxu0 %v1168
  %1185 = vmatpush.xpose.msra.mxu0 %v1166
  %1186 = vmatmul.f32.gmra.mxu0 %v1164
  %v1187 = vpop.f32.mrf.mxu0
  %v1188 = vadd.f32 0.0, %v1187
  %1189 = vdwg.mxu0
  %v1190 = vsel %vm71, %v1097, 0
  %v1192 = vsel %vm71, %v1109, 0
  %v1194 = vsel %vm71, %v1111, 0
  %1196 = vmatpush.xpose.msra.mxu0 0.0
  %1197 = vmatpush.xpose.msra.mxu0 0.0
  %1198 = vmatpush.xpose.msra.mxu0 0.0
  %1199 = vmatpush.xpose.msra.mxu0 0.0
  %1200 = vmatpush.xpose.msra.mxu0 0.0
  %1201 = vmatpush.xpose.msra.mxu0 0.0
  %1202 = vmatpush.xpose.msra.mxu0 0.0
  %1203 = vmatpush.xpose.msra.mxu0 0.0
  %1204 = vmatpush.xpose.msra.mxu0 0.0
  %1205 = vmatpush.xpose.msra.mxu0 0.0
  %1206 = vmatpush.xpose.msra.mxu0 0.0
  %1207 = vmatpush.xpose.msra.mxu0 0.0
  %1208 = vmatpush.xpose.msra.mxu0 0.0
  %1209 = vmatpush.xpose.msra.mxu0 0.0
  %1210 = vmatpush.xpose.msra.mxu0 %v1194
  %1211 = vmatpush.xpose.msra.mxu0 %v1192
  %1212 = vmatmul.f32.gmra.mxu0 %v1190
  %v1213 = vpop.f32.mrf.mxu0
  %v1214 = vadd.f32 0.0, %v1213
  %1215 = vdwg.mxu0
  %v1216 = vsel %vm335, %v1136, -inf
  %1217 = vmax.xlane.f32.xlu0 %v1216
  %v1218 = vpop.xlane.xlu0 %1217
  %v1219 = vsel %vm335, %v1162, -inf
  %1220 = vmax.xlane.f32.xlu0 %v1219
  %v1221 = vpop.xlane.xlu0 %1220
  %v1222 = vsel %vm335, %v1188, -inf
  %1223 = vmax.xlane.f32.xlu0 %v1222
  %v1224 = vpop.xlane.xlu0 %1223
  %v1225 = vsel %vm335, %v1214, -inf
  %1226 = vmax.xlane.f32.xlu0 %v1225
  %v1227 = vpop.xlane.xlu0 %1226
  %v1228 = vsub.f32 %v1136, %v1218
  %v1229 = vsub.f32 %v1162, %v1221
  %v1230 = vsub.f32 %v1188, %v1224
  %v1231 = vsub.f32 %v1214, %v1227
  %v1232 = vmul.f32 %v1228, 1.442695
  %v1233 = vpow.pop %v1232
  %v1234 = vmul.f32 %v1229, 1.442695
  %v1235 = vpow.pop %v1234
  %v1236 = vmul.f32 %v1230, 1.442695
  %v1237 = vpow.pop %v1236
  %v1238 = vmul.f32 %v1231, 1.442695
  %v1239 = vpow.pop %v1238
  %v1240 = vsel %vm335, %v1233, 0.0
  %1241 = vadd.xlane.f32.xlu0 %v1240
  %v1242 = vpop.xlane.xlu0 %1241
  %v1243 = vsel %vm335, %v1235, 0.0
  %1244 = vadd.xlane.f32.xlu0 %v1243
  %v1245 = vpop.xlane.xlu0 %1244
  %v1246 = vsel %vm335, %v1237, 0.0
  %1247 = vadd.xlane.f32.xlu0 %v1246
  %v1248 = vpop.xlane.xlu0 %1247
  %v1249 = vsel %vm335, %v1239, 0.0
  %1250 = vadd.xlane.f32.xlu0 %v1249
  %v1251 = vpop.xlane.xlu0 %1250
  %v1252 = vrcp.pop %v1242
  %v1253 = vrcp.pop %v1245
  %v1254 = vrcp.pop %v1248
  %v1255 = vrcp.pop %v1251
  %v1256 = vmul.f32 %v1233, %v1252
  %v1257 = vmul.f32 %v1235, %v1253
  %v1258 = vmul.f32 %v1237, %v1254
  %v1259 = vmul.f32 %v1239, %v1255
  %1260 = vrot.lane.b32.xlu0 %v786, 96
  %v1261 = vpop.permute.xlu0 %1260
  %1262 = vrot.lane.b32.xlu0 %v789, 96
  %v1263 = vpop.permute.xlu0 %1262
  %v1267 = vsel %vm335, %v1256, 0
  %1269 = vmatpush.msra.mxu0 0.0
  %1270 = vmatpush.msra.mxu0 0.0
  %1271 = vmatpush.msra.mxu0 0.0
  %1272 = vmatpush.msra.mxu0 0.0
  %1273 = vmatpush.msra.mxu0 0.0
  %1274 = vmatpush.msra.mxu0 0.0
  %1275 = vmatpush.msra.mxu0 0.0
  %1276 = vmatpush.msra.mxu0 0.0
  %1277 = vmatpush.msra.mxu0 0.0
  %1278 = vmatpush.msra.mxu0 0.0
  %1279 = vmatpush.msra.mxu0 0.0
  %1280 = vmatpush.msra.mxu0 0.0
  %1281 = vmatpush.msra.mxu0 0.0
  %1282 = vmatpush.msra.mxu0 0.0
  %1283 = vmatpush.msra.mxu0 %v1263
  %1284 = vmatpush.msra.mxu0 %v1261
  %1285 = vmatmul.f32.gmra.mxu0 %v1267
  %v1286 = vpop.f32.mrf.mxu0
  %v1287 = vadd.f32 0.0, %v1286
  %1288 = vdwg.mxu0
  %1289 = vrot.lane.b32.xlu0 %v1101, 96
  %v1290 = vpop.permute.xlu0 %1289
  %1291 = vrot.lane.b32.xlu0 %v1103, 96
  %v1292 = vpop.permute.xlu0 %1291
  %v1296 = vsel %vm335, %v1257, 0
  %1298 = vmatpush.msra.mxu0 0.0
  %1299 = vmatpush.msra.mxu0 0.0
  %1300 = vmatpush.msra.mxu0 0.0
  %1301 = vmatpush.msra.mxu0 0.0
  %1302 = vmatpush.msra.mxu0 0.0
  %1303 = vmatpush.msra.mxu0 0.0
  %1304 = vmatpush.msra.mxu0 0.0
  %1305 = vmatpush.msra.mxu0 0.0
  %1306 = vmatpush.msra.mxu0 0.0
  %1307 = vmatpush.msra.mxu0 0.0
  %1308 = vmatpush.msra.mxu0 0.0
  %1309 = vmatpush.msra.mxu0 0.0
  %1310 = vmatpush.msra.mxu0 0.0
  %1311 = vmatpush.msra.mxu0 0.0
  %1312 = vmatpush.msra.mxu0 %v1292
  %1313 = vmatpush.msra.mxu0 %v1290
  %1314 = vmatmul.f32.gmra.mxu0 %v1296
  %v1315 = vpop.f32.mrf.mxu0
  %v1316 = vadd.f32 0.0, %v1315
  %1317 = vdwg.mxu0
  %1318 = vrot.lane.b32.xlu0 %v1105, 96
  %v1319 = vpop.permute.xlu0 %1318
  %1320 = vrot.lane.b32.xlu0 %v1107, 96
  %v1321 = vpop.permute.xlu0 %1320
  %v1325 = vsel %vm335, %v1258, 0
  %1327 = vmatpush.msra.mxu0 0.0
  %1328 = vmatpush.msra.mxu0 0.0
  %1329 = vmatpush.msra.mxu0 0.0
  %1330 = vmatpush.msra.mxu0 0.0
  %1331 = vmatpush.msra.mxu0 0.0
  %1332 = vmatpush.msra.mxu0 0.0
  %1333 = vmatpush.msra.mxu0 0.0
  %1334 = vmatpush.msra.mxu0 0.0
  %1335 = vmatpush.msra.mxu0 0.0
  %1336 = vmatpush.msra.mxu0 0.0
  %1337 = vmatpush.msra.mxu0 0.0
  %1338 = vmatpush.msra.mxu0 0.0
  %1339 = vmatpush.msra.mxu0 0.0
  %1340 = vmatpush.msra.mxu0 0.0
  %1341 = vmatpush.msra.mxu0 %v1321
  %1342 = vmatpush.msra.mxu0 %v1319
  %1343 = vmatmul.f32.gmra.mxu0 %v1325
  %v1344 = vpop.f32.mrf.mxu0
  %v1345 = vadd.f32 0.0, %v1344
  %1346 = vdwg.mxu0
  %1347 = vrot.lane.b32.xlu0 %v1109, 96
  %v1348 = vpop.permute.xlu0 %1347
  %1349 = vrot.lane.b32.xlu0 %v1111, 96
  %v1350 = vpop.permute.xlu0 %1349
  %v1354 = vsel %vm335, %v1259, 0
  %1356 = vmatpush.msra.mxu0 0.0
  %1357 = vmatpush.msra.mxu0 0.0
  %1358 = vmatpush.msra.mxu0 0.0
  %1359 = vmatpush.msra.mxu0 0.0
  %1360 = vmatpush.msra.mxu0 0.0
  %1361 = vmatpush.msra.mxu0 0.0
  %1362 = vmatpush.msra.mxu0 0.0
  %1363 = vmatpush.msra.mxu0 0.0
  %1364 = vmatpush.msra.mxu0 0.0
  %1365 = vmatpush.msra.mxu0 0.0
  %1366 = vmatpush.msra.mxu0 0.0
  %1367 = vmatpush.msra.mxu0 0.0
  %1368 = vmatpush.msra.mxu0 0.0
  %1369 = vmatpush.msra.mxu0 0.0
  %1370 = vmatpush.msra.mxu0 %v1350
  %1371 = vmatpush.msra.mxu0 %v1348
  %1372 = vmatmul.f32.gmra.mxu0 %v1354
  %v1373 = vpop.f32.mrf.mxu0
  %v1374 = vadd.f32 0.0, %v1373
  %1375 = vdwg.mxu0
  %1377 = vrot.lane.b32.xlu0 %v1316, 8
  %v1378 = vpop.permute.xlu0 %1377
  %1381 = vrot.lane.b32.xlu0 %v1345, 16
  %v1382 = vpop.permute.xlu0 %1381
  %1385 = vrot.lane.b32.xlu0 %v1374, 24
  %v1386 = vpop.permute.xlu0 %1385
  %v1388 = vsel %vm71, %v1287, %v1378
  %v1389 = vsel %vm335, %v1388, %v1382
  %v1390 = vsel %vm337, %v1389, %v1386
  %v1391 = vld [vmem:[%s2 + $0x20] sm:$0xff]
  %v1392 = vld [vmem:[%s2 + $0x50] sm:$0xff]
  %v1393 = vld [vmem:[%s2 + $0x80] sm:$0xff]
  %v1394 = vld [vmem:[%s2 + $0xb0] sm:$0xff]
  %v1395 = vld [vmem:[%s4 + $0x4] sm:$0x1]
  %v1396 = vperm.slane %v1395, 0
  %v1398 = vsel %vm32, %v1090, 0
  %v1401 = vsel %vm32, %v1390, 0
  %1403 = vmatpush.msra.mxu0 0.0
  %1404 = vmatpush.msra.mxu0 0.0
  %1405 = vmatpush.msra.mxu0 0.0
  %1406 = vmatpush.msra.mxu0 0.0
  %1407 = vmatpush.msra.mxu0 0.0
  %1408 = vmatpush.msra.mxu0 0.0
  %1409 = vmatpush.msra.mxu0 0.0
  %1410 = vmatpush.msra.mxu0 0.0
  %1411 = vmatpush.msra.mxu0 0.0
  %1412 = vmatpush.msra.mxu0 0.0
  %1413 = vmatpush.msra.mxu0 0.0
  %1414 = vmatpush.msra.mxu0 0.0
  %1415 = vmatpush.msra.mxu0 %v1394
  %1416 = vmatpush.msra.mxu0 %v1393
  %1417 = vmatpush.msra.mxu0 %v1392
  %1418 = vmatpush.msra.mxu0 %v1391
  %1419 = vmatmul.f32.gmra.mxu0 %v1398
  %v1420 = vpop.f32.mrf.mxu0
  %v1421 = vadd.f32 %v1396, %v1420
  %1422 = vmatmul.f32.gmra.mxu0 %v1401
  %v1423 = vpop.f32.mrf.mxu0
  %v1424 = vadd.f32 %v1396, %v1423
  %1425 = vdwg.mxu0
  %v1426 = vadd.f32 %v707, %v1421
  %v1427 = vadd.f32 %v708, %v1424
  %v1428 = vld [vmem:[%s4 + $0x7] sm:$0x1]
  %v1429 = vld [vmem:[%s4 + $0x8] sm:$0x1]
  %v1430 = vsel %vm32, %v1426, 0.0
  %1431 = vadd.xlane.f32.xlu0 %v1430
  %v1432 = vpop.xlane.xlu0 %1431
  %v1433 = vsel %vm32, %v1427, 0.0
  %1434 = vadd.xlane.f32.xlu0 %v1433
  %v1435 = vpop.xlane.xlu0 %1434
  %v1436 = vmul.f32 %v1432, %v664
  %v1437 = vmul.f32 %v1435, %v664
  %v1438 = vsub.f32 %v1426, %v1436
  %v1439 = vsub.f32 %v1427, %v1437
  %v1440 = vmul.f32 %v1438, %v1438
  %v1441 = vmul.f32 %v1439, %v1439
  %v1442 = vsel %vm32, %v1440, 0.0
  %1443 = vadd.xlane.f32.xlu0 %v1442
  %v1444 = vpop.xlane.xlu0 %1443
  %v1445 = vsel %vm32, %v1441, 0.0
  %1446 = vadd.xlane.f32.xlu0 %v1445
  %v1447 = vpop.xlane.xlu0 %1446
  %v1448 = vmul.f32 %v1444, %v664
  %v1449 = vmul.f32 %v1447, %v664
  %v1450 = vadd.f32 %v1448, 1e-05
  %v1451 = vadd.f32 %v1449, 1e-05
  %v1452 = vrsqrt.pop %v1450
  %v1453 = vmul.f32 %v1452, %v1450
  %v1454 = vmul.f32 %v1453, %v1452
  %v1455 = vmul.f32 0.5, %v1454
  %v1456 = vsub.f32 1.5, %v1455
  %v1457 = vmul.f32 %v1452, %v1456
  %vm1458 = vweird.f32 %v1450
  %vm1459 = vweird.f32 %v1452
  %vm1460 = vmor %vm1458, %vm1459
  %v1461 = vsel %vm1460, %v1452, %v1457
  %v1462 = vrsqrt.pop %v1451
  %v1463 = vmul.f32 %v1462, %v1451
  %v1464 = vmul.f32 %v1463, %v1462
  %v1465 = vmul.f32 0.5, %v1464
  %v1466 = vsub.f32 1.5, %v1465
  %v1467 = vmul.f32 %v1462, %v1466
  %vm1468 = vweird.f32 %v1451
  %vm1469 = vweird.f32 %v1462
  %vm1470 = vmor %vm1468, %vm1469
  %v1471 = vsel %vm1470, %v1462, %v1467
  %v1472 = vmul.f32 %v1438, %v1461
  %v1473 = vmul.f32 %v1439, %v1471
  %v1474 = vperm.slane %v1428, 0
  %v1475 = vmul.f32 %v1472, %v1474
  %v1476 = vmul.f32 %v1473, %v1474
  %v1477 = vperm.slane %v1429, 0
  %v1478 = vadd.f32 %v1475, %v1477
  %v1479 = vadd.f32 %v1476, %v1477
  %v1480 = vld [vmem:[%s2 + $0x28] sm:$0xff]
  %v1481 = vld [vmem:[%s2 + $0x58] sm:$0xff]
  %v1482 = vld [vmem:[%s2 + $0x88] sm:$0xff]
  %v1483 = vld [vmem:[%s2 + $0xb8] sm:$0xff]
  %v1484 = vld [vmem:[%s4 + $0xb] sm:$0x1]
  %v1485 = vperm.slane %v1484, 0
  %v1487 = vsel %vm32, %v1478, 0
  %v1490 = vsel %vm32, %v1479, 0
  %1492 = vmatpush.msra.mxu0 0.0
  %1493 = vmatpush.msra.mxu0 0.0
  %1494 = vmatpush.msra.mxu0 0.0
  %1495 = vmatpush.msra.mxu0 0.0
  %1496 = vmatpush.msra.mxu0 0.0
  %1497 = vmatpush.msra.mxu0 0.0
  %1498 = vmatpush.msra.mxu0 0.0
  %1499 = vmatpush.msra.mxu0 0.0
  %1500 = vmatpush.msra.mxu0 0.0
  %1501 = vmatpush.msra.mxu0 0.0
  %1502 = vmatpush.msra.mxu0 0.0
  %1503 = vmatpush.msra.mxu0 0.0
  %1504 = vmatpush.msra.mxu0 %v1483
  %1505 = vmatpush.msra.mxu0 %v1482
  %1506 = vmatpush.msra.mxu0 %v1481
  %1507 = vmatpush.msra.mxu0 %v1480
  %1508 = vmatmul.f32.gmra.mxu0 %v1487
  %v1509 = vpop.f32.mrf.mxu0
  %v1510 = vadd.f32 %v1485, %v1509
  %1511 = vmatmul.f32.gmra.mxu0 %v1490
  %v1512 = vpop.f32.mrf.mxu0
  %v1513 = vadd.f32 %v1485, %v1512
  %1514 = vdwg.mxu0
  %v1515 = vmax.f32 %v1510, 0.0
  %v1516 = vmax.f32 %v1513, 0.0
  %v1517 = vld [vmem:[%s3] sm:$0xff]
  %v1518 = vld [vmem:[%s3 + $0x8] sm:$0xff]
  %v1519 = vld [vmem:[%s3 + $0x10] sm:$0xff]
  %v1520 = vld [vmem:[%s3 + $0x18] sm:$0xff]
  %v1521 = vld [vmem:[%s3 + $0x20] sm:$0xff]
  %v1522 = vld [vmem:[%s3 + $0x28] sm:$0xff]
  %v1523 = vld [vmem:[%s3 + $0x30] sm:$0xff]
  %v1524 = vld [vmem:[%s3 + $0x38] sm:$0xff]
  %v1525 = vld [vmem:[%s4 + $0xc] sm:$0x1]
  %v1526 = vperm.slane %v1525, 0
  %vm1527 = vcmask 523264
  %v1529 = vsel %vm1527, %v1515, 0
  %v1532 = vsel %vm1527, %v1516, 0
  %1534 = vmatpush.msra.mxu0 0.0
  %1535 = vmatpush.msra.mxu0 0.0
  %1536 = vmatpush.msra.mxu0 0.0
  %1537 = vmatpush.msra.mxu0 0.0
  %1538 = vmatpush.msra.mxu0 0.0
  %1539 = vmatpush.msra.mxu0 0.0
  %1540 = vmatpush.msra.mxu0 0.0
  %1541 = vmatpush.msra.mxu0 0.0
  %1542 = vmatpush.msra.mxu0 %v1524
  %1543 = vmatpush.msra.mxu0 %v1523
  %1544 = vmatpush.msra.mxu0 %v1522
  %1545 = vmatpush.msra.mxu0 %v1521
  %1546 = vmatpush.msra.mxu0 %v1520
  %1547 = vmatpush.msra.mxu0 %v1519
  %1548 = vmatpush.msra.mxu0 %v1518
  %1549 = vmatpush.msra.mxu0 %v1517
  %1550 = vmatmul.f32.gmra.mxu0 %v1529
  %v1551 = vpop.f32.mrf.mxu0
  %v1552 = vadd.f32 %v1526, %v1551
  %1553 = vmatmul.f32.gmra.mxu0 %v1532
  %v1554 = vpop.f32.mrf.mxu0
  %v1555 = vadd.f32 %v1526, %v1554
  %1556 = vdwg.mxu0
  %v1557 = vadd.f32 %v1478, %v1552
  %v1558 = vadd.f32 %v1479, %v1555
  %v1559 = vld [vmem:[%s4 + $0x9] sm:$0x1]
  %v1560 = vld [vmem:[%s4 + $0xa] sm:$0x1]
  %v1561 = vsel %vm32, %v1557, 0.0
  %1562 = vadd.xlane.f32.xlu0 %v1561
  %v1563 = vpop.xlane.xlu0 %1562
  %v1564 = vsel %vm32, %v1558, 0.0
  %1565 = vadd.xlane.f32.xlu0 %v1564
  %v1566 = vpop.xlane.xlu0 %1565
  %v1567 = vmul.f32 %v1563, %v664
  %v1568 = vmul.f32 %v1566, %v664
  %v1569 = vsub.f32 %v1557, %v1567
  %v1570 = vsub.f32 %v1558, %v1568
  %v1571 = vmul.f32 %v1569, %v1569
  %v1572 = vmul.f32 %v1570, %v1570
  %v1573 = vsel %vm32, %v1571, 0.0
  %1574 = vadd.xlane.f32.xlu0 %v1573
  %v1575 = vpop.xlane.xlu0 %1574
  %v1576 = vsel %vm32, %v1572, 0.0
  %1577 = vadd.xlane.f32.xlu0 %v1576
  %v1578 = vpop.xlane.xlu0 %1577
  %v1579 = vmul.f32 %v1575, %v664
  %v1580 = vmul.f32 %v1578, %v664
  %v1581 = vadd.f32 %v1579, 1e-05
  %v1582 = vadd.f32 %v1580, 1e-05
  %v1583 = vrsqrt.pop %v1581
  %v1584 = vmul.f32 %v1583, %v1581
  %v1585 = vmul.f32 %v1584, %v1583
  %v1586 = vmul.f32 0.5, %v1585
  %v1587 = vsub.f32 1.5, %v1586
  %v1588 = vmul.f32 %v1583, %v1587
  %vm1589 = vweird.f32 %v1581
  %vm1590 = vweird.f32 %v1583
  %vm1591 = vmor %vm1589, %vm1590
  %v1592 = vsel %vm1591, %v1583, %v1588
  %v1593 = vrsqrt.pop %v1582
  %v1594 = vmul.f32 %v1593, %v1582
  %v1595 = vmul.f32 %v1594, %v1593
  %v1596 = vmul.f32 0.5, %v1595
  %v1597 = vsub.f32 1.5, %v1596
  %v1598 = vmul.f32 %v1593, %v1597
  %vm1599 = vweird.f32 %v1582
  %vm1600 = vweird.f32 %v1593
  %vm1601 = vmor %vm1599, %vm1600
  %v1602 = vsel %vm1601, %v1593, %v1598
  %v1603 = vmul.f32 %v1569, %v1592
  %v1604 = vmul.f32 %v1570, %v1602
  %v1605 = vperm.slane %v1559, 0
  %v1606 = vmul.f32 %v1603, %v1605
  %v1607 = vmul.f32 %v1604, %v1605
  %v1608 = vperm.slane %v1560, 0
  %v1609 = vadd.f32 %v1606, %v1608
  %v1610 = vadd.f32 %v1607, %v1608
  %1611 = vst.msk [vmem:[%s5] sm:$0xff] %vm32, %v1609
  %1612 = vst.msk [vmem:[%s5 + $0x8] sm:$0xff] %vm32, %v1610
  // Predicated region
  $region22: #{transformer_decoder_layer.1} parent=0 // pred_check
    _
  $region23: #{transformer_decoder_layer.1} parent=0 // pred_check_branch
    %1614 = sbr.rel (0) target = $region25
  $region24: #{transformer_decoder_layer.1} parent=0 // pred_region
    _
  $region25: #{transformer_decoder_layer.1} parent=0 // pred_fallthru
    _
  // Predicated region
  $region26: #{transformer_decoder_layer.1} parent=0 // pred_check
    _
  $region27: #{transformer_decoder_layer.1} parent=0 // pred_check_branch
    %1616 = sbr.rel (0) target = $region29
  $region28: #{transformer_decoder_layer.1} parent=0 // pred_region
    _
  $region29: #{transformer_decoder_layer.1} parent=0 // pred_fallthru
    _

</llo_original>
